<compile_context>
chip_gen: v7x
topology: tpu7x:2x2x1
jax: 0.10.0
libtpu: 0.0.40
codegen_flags: <defaults>
</compile_context>

<pallas_src>
import functools

import jax
import jax.numpy as jnp
from jax.experimental import pallas as pl
from jax.experimental.pallas import tpu as pltpu


def _round_up(x, m):
    return (x + m - 1) // m * m


# ---------------------------------------------------------------------------
# Pallas kernel: fused conv(all Ks) matmul + roll/shift-add + masked max-pool
#                + bias/ReLU + final Linear, one batch tile per grid step.
# ---------------------------------------------------------------------------
def _cnn_text_kernel(kernel_sizes, Co_pad, L_real,
                     x_ref,        # (TN, Lp, Dp)   batch tile of embeddings
                     wall_ref,     # (Dp, P)        all conv taps, lane-aligned
                     ball_ref,     # (1, nK*Co_pad) conv biases, lane-aligned
                     fcw_ref,      # (nK*Co_pad, Cp) Linear weight, lane-padded
                     fcb_ref,      # (1, Cp)        Linear bias, lane-padded
                     out_ref):     # (TN, Cp)       padded logits
    TN, Lp, Dp = x_ref.shape
    xf = x_ref[...].reshape(TN * Lp, Dp)            # merge leading dims (free)

    # Single fused MXU matmul covering every tap of every kernel size.
    # bf16 (or f32) inputs, f32 accumulation.
    y = jnp.dot(xf, wall_ref[...], preferred_element_type=jnp.float32)  # (TN*Lp, P)

    row_ids = jax.lax.broadcasted_iota(jnp.int32, (TN, Lp, Co_pad), 1)
    neg = jnp.finfo(jnp.float32).min

    pooled = []
    tap = 0
    for K in kernel_sizes:
        T = L_real - K + 1                           # valid conv output length
        acc = y[:, tap * Co_pad:(tap + 1) * Co_pad]  # lane-aligned column block
        for k in range(1, K):
            blk = y[:, (tap + k) * Co_pad:(tap + k + 1) * Co_pad]
            # Time shift by k as a cheap XLU sublane rotation over the flat
            # (TN*Lp) row axis.  Rows that wrap across a batch boundary all
            # have local time index t >= Lp - k >= T and are masked to -inf
            # below, so the circular wrap never reaches a valid output row.
            acc = acc + pltpu.roll(blk, shift=TN * Lp - k, axis=0)
        tap += K
        acc = acc.reshape(TN, Lp, Co_pad)
        acc = jnp.where(row_ids < T, acc, neg)       # mask padded/invalid rows
        pooled.append(jnp.max(acc, axis=1))          # (TN, Co_pad)

    feat = jnp.concatenate(pooled, axis=1)           # (TN, nK*Co_pad)
    # bias + ReLU after pooling: valid ONLY because the conv bias is a
    # per-channel constant (a monotone shift commutes with max over time).
    feat = jnp.maximum(feat + ball_ref[...], 0.0)

    # TODO(synk): training-mode dropout not implemented (inference: identity).
    logits = jnp.dot(feat, fcw_ref[...], preferred_element_type=jnp.float32)
    out_ref[...] = (logits + fcb_ref[...]).astype(out_ref.dtype)


# ---------------------------------------------------------------------------
# Wrapper: parameter packing / padding + chip-aware tiling + pallas_call
# ---------------------------------------------------------------------------
def cnn_text_forward(x, conv_ws, conv_bs, fc_w, fc_b, kernel_sizes, *,
                     batch_tile=128, compute_dtype=jnp.bfloat16):
    """x: (N, L, D).  conv_ws[i]: (Ks[i], Co, D).  conv_bs[i]: (1, Co).
    fc_w: (len(Ks)*Co, C).  fc_b: (1, C).  Returns logits (N, C) float32.

    compute_dtype (default bf16) applies only to the fused conv matmul inputs;
    accumulation and the whole epilogue stay f32."""
    N, L, D = x.shape
    Co = conv_ws[0].shape[1]
    C = fc_w.shape[1]
    nK = len(kernel_sizes)
    n_taps = sum(kernel_sizes)
    assert L >= max(kernel_sizes), (
        "sequence length must be >= max kernel size (valid conv)")

    # Alignment / padding choices (done once, in the wrapper).
    Dp = _round_up(D, 128)                 # lane-align embedding dim
    Lp = _round_up(L, 8)                   # sublane-align sequence dim
    Cp = _round_up(C, 128)                 # lane-dense logits store
    Co_pad = _round_up(Co, 128)            # lane-align each tap's output block
    P = n_taps * Co_pad                    # fused matmul output width
    F = nK * Co_pad                        # pooled feature width

    # --- chip-aware VMEM budget & batch-tile selection ---------------------
    try:
        vmem_cap = int(pltpu.get_tpu_info().vmem_capacity_bytes)
    except Exception:
        vmem_cap = 64 << 20                # conservative: v7x per-TC VMEM

    in_isz = jnp.dtype(compute_dtype).itemsize

    def est_bytes(tn):
        x_tile = 2 * tn * Lp * Dp * in_isz          # double-buffered x tile
        weights = Dp * P * in_isz + 4 * (F + F * Cp + Cp)
        y_slab = 4 * tn * Lp * P                    # f32 fused matmul result
        epilogue = 2 * 4 * tn * Lp * Co_pad         # acc + rolled tap block
        out_tile = 2 * 4 * tn * Cp                  # double-buffered out tile
        return x_tile + weights + y_slab + epilogue + out_tile

    TN = _round_up(min(batch_tile, _round_up(N, 8)), 8)
    # Shrink TN until the working set fits the chip's VMEM (v7x: 64 MiB/TC).
    while TN > 8 and est_bytes(TN) > int(0.70 * vmem_cap):
        TN = max(8, _round_up(TN // 2, 8))
    # v7x has 2 TensorCores: prefer >= 2 grid steps so the "parallel" batch
    # axis can be sharded; costs only one extra ~0.35us step on 1-TC chips.
    while TN > 8 and _round_up(N, TN) // TN < 2:
        TN = max(8, _round_up(TN // 2, 8))
    Np = _round_up(N, TN)
    # TODO(synk): very long sequences (f32 y-slab > VMEM even at TN=8) need a
    # sequence-length grid axis with a running-max accumulator; not needed here.

    vmem_limit = int(min(max(int(1.4 * est_bytes(TN)), 32 << 20),
                         int(0.90 * vmem_cap)))

    # --- pack & pad parameters (done once, outside the kernel) -------------
    x_pad = jnp.pad(x, ((0, Np - N), (0, Lp - L), (0, Dp - D)))
    x_pad = x_pad.astype(compute_dtype)

    # Every conv tap gets its own lane-aligned column block of width Co_pad.
    w_blocks = []
    for w in conv_ws:                              # w: (K, Co, D)
        for k in range(w.shape[0]):
            w_blocks.append(jnp.pad(w[k].T, ((0, Dp - D), (0, Co_pad - Co))))
    w_all = jnp.concatenate(w_blocks, axis=1).astype(compute_dtype)   # (Dp, P)

    b_all = jnp.concatenate(
        [jnp.pad(b.reshape(1, -1).astype(jnp.float32),
                 ((0, 0), (0, Co_pad - Co))) for b in conv_bs], axis=1)  # (1, F)

    fw_blocks = []
    for i in range(nK):
        blk = fc_w[i * Co:(i + 1) * Co, :].astype(jnp.float32)        # (Co, C)
        fw_blocks.append(jnp.pad(blk, ((0, Co_pad - Co), (0, Cp - C))))
    fcw = jnp.concatenate(fw_blocks, axis=0)                          # (F, Cp)
    fcb = jnp.pad(fc_b.reshape(1, -1).astype(jnp.float32),
                  ((0, 0), (0, Cp - C)))                              # (1, Cp)

    kernel = functools.partial(_cnn_text_kernel, tuple(kernel_sizes), Co_pad, L)

    out = pl.pallas_call(
        kernel,
        out_shape=jax.ShapeDtypeStruct((Np, Cp), jnp.float32),
        grid=(Np // TN,),
        in_specs=[
            pl.BlockSpec((TN, Lp, Dp), lambda i: (i, 0, 0)),   # batch-tiled x
            pl.BlockSpec(w_all.shape, lambda i: (0, 0)),       # resident weights
            pl.BlockSpec(b_all.shape, lambda i: (0, 0)),
            pl.BlockSpec(fcw.shape, lambda i: (0, 0)),
            pl.BlockSpec(fcb.shape, lambda i: (0, 0)),
        ],
        out_specs=pl.BlockSpec((TN, Cp), lambda i: (i, 0)),
        compiler_params=pltpu.CompilerParams(
            dimension_semantics=("parallel",),
            vmem_limit_bytes=vmem_limit,
        ),
    )(x_pad, w_all, b_all, fcw, fcb)

    return out[:N, :C]


# ---------------------------------------------------------------------------
# Pure-JAX reference (mirrors the PyTorch forward) for a sanity check
# ---------------------------------------------------------------------------
def cnn_text_reference(x, conv_ws, conv_bs, fc_w, fc_b, kernel_sizes):
    pooled = []
    N, L, D = x.shape
    for K, w, b in zip(kernel_sizes, conv_ws, conv_bs):
        T = L - K + 1
        acc = jnp.zeros((N, T, w.shape[1]), jnp.float32)
        for k in range(K):
            acc = acc + jnp.einsum('ntd,cd->ntc', x[:, k:k + T, :], w[k])
        acc = jnp.maximum(acc + b[None, :, :], 0.0)
        pooled.append(jnp.max(acc, axis=1))
    feat = jnp.concatenate(pooled, axis=1)
    return feat @ fc_w + fc_b


# ---------------------------------------------------------------------------
if __name__ == "__main__":
    # Small shapes consistent with the module's forward.
    L = 16             # sequence length
    D = 32             # embedding_dim (module default is 300; small here)
    Co = 8             # kernel_num
    Ks = (3, 4, 5)     # kernel_sizes
    C = 2              # output_size

    key = jax.random.PRNGKey(0)
    keys = jax.random.split(key, 2 * len(Ks) + 4)

    # Deterministic synthetic parameters (Conv2d(1, Co, (K, D)) and Linear).
    conv_ws, conv_bs = [], []
    for i, K in enumerate(Ks):
        # PyTorch conv weight is (Co, 1, K, D); we store it as (K, Co, D).
        w = 0.1 * jax.random.normal(keys[2 * i], (K, Co, D), jnp.float32)
        b = 0.1 * jax.random.normal(keys[2 * i + 1], (1, Co), jnp.float32)
        conv_ws.append(w)
        conv_bs.append(b)
    # PyTorch Linear weight is (C, len(Ks)*Co); we store its transpose.
    fc_w = 0.1 * jax.random.normal(keys[-4], (len(Ks) * Co, C), jnp.float32)
    fc_b = 0.1 * jax.random.normal(keys[-3], (1, C), jnp.float32)

    # Test 1: tiny batch, f32 matmul inputs (tight tolerance).
    x1 = jax.random.normal(keys[-2], (2, L, D), jnp.float32)
    out1 = jax.block_until_ready(
        cnn_text_forward(x1, conv_ws, conv_bs, fc_w, fc_b, Ks,
                         compute_dtype=jnp.float32))
    ref1 = cnn_text_reference(x1, conv_ws, conv_bs, fc_w, fc_b, Ks)
    assert out1.shape == (2, C)
    assert jnp.allclose(out1, ref1, rtol=1e-4, atol=1e-4), (out1, ref1)

    # Test 2: default bf16 matmul inputs, multi-step batch grid (looser tol,
    # f32 accumulation keeps the error small).
    x2 = jax.random.normal(keys[-1], (12, L, D), jnp.float32)
    out2 = jax.block_until_ready(
        cnn_text_forward(x2, conv_ws, conv_bs, fc_w, fc_b, Ks, batch_tile=8))
    ref2 = cnn_text_reference(x2, conv_ws, conv_bs, fc_w, fc_b, Ks)
    assert out2.shape == (12, C)
    assert jnp.allclose(out2, ref2, rtol=5e-2, atol=5e-2), (out2, ref2)

    print("KERNEL_OK")
</pallas_src>

<mosaic_0001>
module attributes {stable_mosaic.version = 11 : i64} {
  func.func @_cnn_text_kernel(%arg0: i32, %arg1: memref<8x16x128xf32, #tpu.memory_space<vmem>>, %arg2: memref<128x1536xf32, #tpu.memory_space<vmem>>, %arg3: memref<1x384xf32, #tpu.memory_space<vmem>>, %arg4: memref<384x128xf32, #tpu.memory_space<vmem>>, %arg5: memref<1x128xf32, #tpu.memory_space<vmem>>, %arg6: memref<8x128xf32, #tpu.memory_space<vmem>>) attributes {dimension_semantics = [#tpu.dimension_semantics<parallel>], iteration_bounds = array<i64: 1>, scalar_prefetch = 0 : i64, scratch_operands = 0 : i64, tpu.core_type = #tpu.core_type<tc>, window_params = [{transform_indices = @transform_0, window_bounds = array<i64: 8, 16, 128>}, {pipeline_mode = #tpu.pipeline_mode<synchronous>, transform_indices = @transform_1, window_bounds = array<i64: 128, 1536>}, {pipeline_mode = #tpu.pipeline_mode<synchronous>, transform_indices = @transform_2, window_bounds = array<i64: 1, 384>}, {pipeline_mode = #tpu.pipeline_mode<synchronous>, transform_indices = @transform_3, window_bounds = array<i64: 384, 128>}, {pipeline_mode = #tpu.pipeline_mode<synchronous>, transform_indices = @transform_4, window_bounds = array<i64: 1, 128>}, {transform_indices = @transform_5, window_bounds = array<i64: 8, 128>}]} {
    %c0 = arith.constant 0 : index
    %c0_0 = arith.constant 0 : index
    %c0_1 = arith.constant 0 : index
    %0 = vector.load %arg1[%c0, %c0_0, %c0_1] : memref<8x16x128xf32, #tpu.memory_space<vmem>>, vector<8x16x128xf32>
    %1 = vector.shape_cast %0 : vector<8x16x128xf32> to vector<128x128xf32>
    %c0_2 = arith.constant 0 : index
    %c0_3 = arith.constant 0 : index
    %2 = vector.load %arg2[%c0_2, %c0_3] : memref<128x1536xf32, #tpu.memory_space<vmem>>, vector<128x1536xf32>
    %cst = arith.constant dense<0.000000e+00> : vector<128x1536xf32>
    %3 = tpu.matmul %1, %2, %cst {dimension_numbers = #tpu.dot_dimension_numbers<[1], [0], [0], [1], [0, 0, 1, 1], [], []>} : vector<128x128xf32>, vector<128x1536xf32>, vector<128x1536xf32> -> vector<128x1536xf32>
    %4 = tpu.iota {dimensions = array<i32: 1>} : vector<8x16x128xi32>
    %5 = vector.extract_strided_slice %3 {offsets = [0, 0], sizes = [128, 128], strides = [1, 1]} : vector<128x1536xf32> to vector<128x128xf32>
    %6 = vector.extract_strided_slice %3 {offsets = [0, 128], sizes = [128, 128], strides = [1, 1]} : vector<128x1536xf32> to vector<128x128xf32>
    %c127_i32 = arith.constant 127 : i32
    %7 = tpu.dynamic_rotate %6 by %c127_i32 dim 0 : vector<128x128xf32>, i32 -> vector<128x128xf32>
    %8 = arith.addf %5, %7 : vector<128x128xf32>
    %9 = vector.extract_strided_slice %3 {offsets = [0, 256], sizes = [128, 128], strides = [1, 1]} : vector<128x1536xf32> to vector<128x128xf32>
    %c126_i32 = arith.constant 126 : i32
    %10 = tpu.dynamic_rotate %9 by %c126_i32 dim 0 : vector<128x128xf32>, i32 -> vector<128x128xf32>
    %11 = arith.addf %8, %10 : vector<128x128xf32>
    %12 = vector.shape_cast %11 : vector<128x128xf32> to vector<8x16x128xf32>
    %c14_i32 = arith.constant 14 : i32
    %13 = vector.broadcast %c14_i32 : i32 to vector<8x16x128xi32>
    %14 = arith.cmpi slt, %4, %13 : vector<8x16x128xi32>
    %cst_4 = arith.constant -3.40282347E+38 : f32
    %15 = vector.broadcast %cst_4 : f32 to vector<8x16x128xf32>
    %16 = arith.select %14, %12, %15 : vector<8x16x128xi1>, vector<8x16x128xf32>
    %cst_5 = arith.constant dense<0xFF800000> : vector<8x128xf32>
    %17 = vector.multi_reduction <maximumf>, %16, %cst_5 [1] : vector<8x16x128xf32> to vector<8x128xf32>
    %18 = vector.extract_strided_slice %3 {offsets = [0, 384], sizes = [128, 128], strides = [1, 1]} : vector<128x1536xf32> to vector<128x128xf32>
    %19 = vector.extract_strided_slice %3 {offsets = [0, 512], sizes = [128, 128], strides = [1, 1]} : vector<128x1536xf32> to vector<128x128xf32>
    %c127_i32_6 = arith.constant 127 : i32
    %20 = tpu.dynamic_rotate %19 by %c127_i32_6 dim 0 : vector<128x128xf32>, i32 -> vector<128x128xf32>
    %21 = arith.addf %18, %20 : vector<128x128xf32>
    %22 = vector.extract_strided_slice %3 {offsets = [0, 640], sizes = [128, 128], strides = [1, 1]} : vector<128x1536xf32> to vector<128x128xf32>
    %c126_i32_7 = arith.constant 126 : i32
    %23 = tpu.dynamic_rotate %22 by %c126_i32_7 dim 0 : vector<128x128xf32>, i32 -> vector<128x128xf32>
    %24 = arith.addf %21, %23 : vector<128x128xf32>
    %25 = vector.extract_strided_slice %3 {offsets = [0, 768], sizes = [128, 128], strides = [1, 1]} : vector<128x1536xf32> to vector<128x128xf32>
    %c125_i32 = arith.constant 125 : i32
    %26 = tpu.dynamic_rotate %25 by %c125_i32 dim 0 : vector<128x128xf32>, i32 -> vector<128x128xf32>
    %27 = arith.addf %24, %26 : vector<128x128xf32>
    %28 = vector.shape_cast %27 : vector<128x128xf32> to vector<8x16x128xf32>
    %c13_i32 = arith.constant 13 : i32
    %29 = vector.broadcast %c13_i32 : i32 to vector<8x16x128xi32>
    %30 = arith.cmpi slt, %4, %29 : vector<8x16x128xi32>
    %cst_8 = arith.constant -3.40282347E+38 : f32
    %31 = vector.broadcast %cst_8 : f32 to vector<8x16x128xf32>
    %32 = arith.select %30, %28, %31 : vector<8x16x128xi1>, vector<8x16x128xf32>
    %cst_9 = arith.constant dense<0xFF800000> : vector<8x128xf32>
    %33 = vector.multi_reduction <maximumf>, %32, %cst_9 [1] : vector<8x16x128xf32> to vector<8x128xf32>
    %34 = vector.extract_strided_slice %3 {offsets = [0, 896], sizes = [128, 128], strides = [1, 1]} : vector<128x1536xf32> to vector<128x128xf32>
    %35 = vector.extract_strided_slice %3 {offsets = [0, 1024], sizes = [128, 128], strides = [1, 1]} : vector<128x1536xf32> to vector<128x128xf32>
    %c127_i32_10 = arith.constant 127 : i32
    %36 = tpu.dynamic_rotate %35 by %c127_i32_10 dim 0 : vector<128x128xf32>, i32 -> vector<128x128xf32>
    %37 = arith.addf %34, %36 : vector<128x128xf32>
    %38 = vector.extract_strided_slice %3 {offsets = [0, 1152], sizes = [128, 128], strides = [1, 1]} : vector<128x1536xf32> to vector<128x128xf32>
    %c126_i32_11 = arith.constant 126 : i32
    %39 = tpu.dynamic_rotate %38 by %c126_i32_11 dim 0 : vector<128x128xf32>, i32 -> vector<128x128xf32>
    %40 = arith.addf %37, %39 : vector<128x128xf32>
    %41 = vector.extract_strided_slice %3 {offsets = [0, 1280], sizes = [128, 128], strides = [1, 1]} : vector<128x1536xf32> to vector<128x128xf32>
    %c125_i32_12 = arith.constant 125 : i32
    %42 = tpu.dynamic_rotate %41 by %c125_i32_12 dim 0 : vector<128x128xf32>, i32 -> vector<128x128xf32>
    %43 = arith.addf %40, %42 : vector<128x128xf32>
    %44 = vector.extract_strided_slice %3 {offsets = [0, 1408], sizes = [128, 128], strides = [1, 1]} : vector<128x1536xf32> to vector<128x128xf32>
    %c124_i32 = arith.constant 124 : i32
    %45 = tpu.dynamic_rotate %44 by %c124_i32 dim 0 : vector<128x128xf32>, i32 -> vector<128x128xf32>
    %46 = arith.addf %43, %45 : vector<128x128xf32>
    %47 = vector.shape_cast %46 : vector<128x128xf32> to vector<8x16x128xf32>
    %c12_i32 = arith.constant 12 : i32
    %48 = vector.broadcast %c12_i32 : i32 to vector<8x16x128xi32>
    %49 = arith.cmpi slt, %4, %48 : vector<8x16x128xi32>
    %cst_13 = arith.constant -3.40282347E+38 : f32
    %50 = vector.broadcast %cst_13 : f32 to vector<8x16x128xf32>
    %51 = arith.select %49, %47, %50 : vector<8x16x128xi1>, vector<8x16x128xf32>
    %cst_14 = arith.constant dense<0xFF800000> : vector<8x128xf32>
    %52 = vector.multi_reduction <maximumf>, %51, %cst_14 [1] : vector<8x16x128xf32> to vector<8x128xf32>
    %53 = tpu.concatenate %17, %33, %52 in 1 : vector<8x128xf32>, vector<8x128xf32>, vector<8x128xf32> -> vector<8x384xf32>
    %c0_15 = arith.constant 0 : index
    %c0_16 = arith.constant 0 : index
    %54 = vector.load %arg3[%c0_15, %c0_16] : memref<1x384xf32, #tpu.memory_space<vmem>>, vector<1x384xf32>
    %55 = vector.broadcast %54 : vector<1x384xf32> to vector<8x384xf32>
    %56 = arith.addf %53, %55 : vector<8x384xf32>
    %cst_17 = arith.constant 0.000000e+00 : f32
    %57 = vector.broadcast %cst_17 : f32 to vector<8x384xf32>
    %58 = arith.maximumf %56, %57 : vector<8x384xf32>
    %c0_18 = arith.constant 0 : index
    %c0_19 = arith.constant 0 : index
    %59 = vector.load %arg4[%c0_18, %c0_19] : memref<384x128xf32, #tpu.memory_space<vmem>>, vector<384x128xf32>
    %cst_20 = arith.constant dense<0.000000e+00> : vector<8x128xf32>
    %60 = tpu.matmul %58, %59, %cst_20 {dimension_numbers = #tpu.dot_dimension_numbers<[1], [0], [0], [1], [0, 0, 1, 1], [], []>} : vector<8x384xf32>, vector<384x128xf32>, vector<8x128xf32> -> vector<8x128xf32>
    %c0_21 = arith.constant 0 : index
    %c0_22 = arith.constant 0 : index
    %61 = vector.load %arg5[%c0_21, %c0_22] : memref<1x128xf32, #tpu.memory_space<vmem>>, vector<1x128xf32>
    %62 = vector.broadcast %61 : vector<1x128xf32> to vector<8x128xf32>
    %63 = arith.addf %60, %62 : vector<8x128xf32>
    %c0_23 = arith.constant 0 : index
    %c0_24 = arith.constant 0 : index
    %64 = vector.load %arg6[%c0_23, %c0_24] : memref<8x128xf32, #tpu.memory_space<vmem>>, vector<8x128xf32>
    tpu.vector_store %arg6[%c0_23, %c0_24], %63 {strides = array<i32>} : memref<8x128xf32, #tpu.memory_space<vmem>>, vector<8x128xf32>,
    return
  }
  func.func @transform_0(%arg0: i32) -> (i32, i32, i32) {
    %c0_i32 = arith.constant 0 : i32
    %c0_i32_0 = arith.constant 0 : i32
    %c0_i32_1 = arith.constant 0 : i32
    return %arg0, %c0_i32, %c0_i32_0 : i32, i32, i32
  }
  func.func @transform_1(%arg0: i32) -> (i32, i32) {
    %c0_i32 = arith.constant 0 : i32
    %c0_i32_0 = arith.constant 0 : i32
    %c0_i32_1 = arith.constant 0 : i32
    return %c0_i32, %c0_i32_0 : i32, i32
  }
  func.func @transform_2(%arg0: i32) -> (i32, i32) {
    %c0_i32 = arith.constant 0 : i32
    %c0_i32_0 = arith.constant 0 : i32
    %c0_i32_1 = arith.constant 0 : i32
    return %c0_i32, %c0_i32_0 : i32, i32
  }
  func.func @transform_3(%arg0: i32) -> (i32, i32) {
    %c0_i32 = arith.constant 0 : i32
    %c0_i32_0 = arith.constant 0 : i32
    %c0_i32_1 = arith.constant 0 : i32
    return %c0_i32, %c0_i32_0 : i32, i32
  }
  func.func @transform_4(%arg0: i32) -> (i32, i32) {
    %c0_i32 = arith.constant 0 : i32
    %c0_i32_0 = arith.constant 0 : i32
    %c0_i32_1 = arith.constant 0 : i32
    return %c0_i32, %c0_i32_0 : i32, i32
  }
  func.func @transform_5(%arg0: i32) -> (i32, i32) {
    %c0_i32 = arith.constant 0 : i32
    %c0_i32_0 = arith.constant 0 : i32
    return %arg0, %c0_i32 : i32, i32
  }
}

</mosaic_0001>

<llo_original>
// kernel: tpu_custom_call.1
$region0: #{tpu_custom_call.1}
  #allocation0 [shape = 'u32[]', space=smem, size = 0x4, offset = 0x4, fixed_abs, tag = 'smem constant byte address 0x4 - core index']
  #allocation1 [shape = 'u32[144,128]{1,0:T(1,128)}', space=vmem, size = 0x12000, scoped, tag = 'internal scratch']
  %s0 = inlined_call_operand.hbm [shape: f32[8,16,128], index: 0, kind: input, shape index: {}]
  %s1 = inlined_call_operand.hbm [shape: f32[128,1536], index: 1, kind: input, shape index: {}]
  %s2 = inlined_call_operand.vmem [shape: f32[1,384], index: 2, kind: input, shape index: {}]
  %s3 = inlined_call_operand.hbm [shape: f32[384,128], index: 3, kind: input, shape index: {}]
  %s4 = inlined_call_operand.vmem [shape: f32[1,128], index: 4, kind: input, shape index: {}]
  %s5 = inlined_call_operand.hbm [shape: f32[8,128], index: 5, kind: output, shape index: {}]
  %s6 = sld [smem:[#allocation0]]
  $region42: #{tpu_custom_call.1} parent=0
    _
  %s8 = ssub.s32 1, %s6
  %s9 = scalar_select 0, %s8, %s6
  $region1: #{tpu_custom_call.1} parent=0
    #allocation2 [shape = 'u8[65536]{0}', space=vmem, size = 0x10000, scoped, tag = 'input window, operand 0, single buffered']
    #allocation3 [shape = 's32[1]{0}', space=sflag, size = 0x4, scoped, tag = 'scoped memory for tpu_custom_call.1']
    #allocation4 [shape = 's32[1]{0}', space=sflag, size = 0x4, scoped, tag = 'scoped memory for tpu_custom_call.1']
    #allocation5 [shape = 'u8[786432]{0}', space=vmem, size = 0xc0000, scoped, tag = 'input window, operand 1, single buffered']
    #allocation6 [shape = 's32[1]{0}', space=sflag, size = 0x4, scoped, tag = 'scoped memory for tpu_custom_call.1']
    #allocation7 [shape = 'u8[196608]{0}', space=vmem, size = 0x30000, scoped, tag = 'input window, operand 3, single buffered']
    #allocation8 [shape = 'u8[4096]{0}', space=vmem, size = 0x1000, scoped, tag = 'output window, operand 0, single buffered']
    %10 = vsyncpa [#allocation3], 0
    %11 = vsyncpa [#allocation6], 0
    %12 = vsyncpa [#allocation4], 0
    // Predicated region
    $region2: #{tpu_custom_call.1} parent=1 // pred_check
      _
    $region3: #{tpu_custom_call.1} parent=1 // pred_check_branch
      %14 = sbr.rel (0) target = $region5
    $region4: #{tpu_custom_call.1} parent=1 // pred_region
      %s16 = ssub.s32 2048, 2048
      %17 = vsyncadd [#allocation3], %s16
      %s18 = sshll.u32 [#allocation2], 4
      %s19 = int_to_ptr.vmem [resolvable:$true] %s18
      %24 = dma.hbm_to_vmem [thread:$0]  %s0, 2048, %s19, [#allocation3], 128, 128, 8
    $region5: #{tpu_custom_call.1} parent=1 // pred_fallthru
      _
    // Predicated region
    $region6: #{tpu_custom_call.1} parent=1 // pred_check
      _
    $region7: #{tpu_custom_call.1} parent=1 // pred_check_branch
      %26 = sbr.rel (0) target = $region9
    $region8: #{tpu_custom_call.1} parent=1 // pred_region
      %s28 = ssub.s32 24576, 24576
      %29 = vsyncadd [#allocation6], %s28
      %s30 = sshll.u32 [#allocation5], 4
      %s31 = int_to_ptr.vmem [resolvable:$true] %s30
      %36 = dma.hbm_to_vmem [thread:$0]  %s1, 24576, %s31, [#allocation6], 1536, 1536, 96
    $region9: #{tpu_custom_call.1} parent=1 // pred_fallthru
      _
    // Predicated region
    $region10: #{tpu_custom_call.1} parent=1 // pred_check
      _
    $region11: #{tpu_custom_call.1} parent=1 // pred_check_branch
      %38 = sbr.rel (0) target = $region13
    $region12: #{tpu_custom_call.1} parent=1 // pred_region
      _
    $region13: #{tpu_custom_call.1} parent=1 // pred_fallthru
      _
    // Predicated region
    $region14: #{tpu_custom_call.1} parent=1 // pred_check
      _
    $region15: #{tpu_custom_call.1} parent=1 // pred_check_branch
      %40 = sbr.rel (0) target = $region17
    $region16: #{tpu_custom_call.1} parent=1 // pred_region
      %s42 = ssub.s32 6144, 6144
      %43 = vsyncadd [#allocation6], %s42
      %s44 = sshll.u32 [#allocation7], 4
      %s45 = int_to_ptr.vmem [resolvable:$true] %s44
      %50 = dma.hbm_to_vmem [thread:$0]  %s3, 6144, %s45, [#allocation6], 128, 128, 8
    $region17: #{tpu_custom_call.1} parent=1 // pred_fallthru
      _
    // Predicated region
    $region18: #{tpu_custom_call.1} parent=1 // pred_check
      _
    $region19: #{tpu_custom_call.1} parent=1 // pred_check_branch
      %52 = sbr.rel (0) target = $region21
    $region20: #{tpu_custom_call.1} parent=1 // pred_region
      _
    $region21: #{tpu_custom_call.1} parent=1 // pred_fallthru
      _
    // Predicated region
    $region22: #{tpu_custom_call.1} parent=1 // pred_check
      _
    $region23: #{tpu_custom_call.1} parent=1 // pred_check_branch
      %54 = sbr.rel (0) target = $region25
    $region24: #{tpu_custom_call.1} parent=1 // pred_region
      %55 = dma.done [#allocation3], 2048
    $region25: #{tpu_custom_call.1} parent=1 // pred_fallthru
      _
    // Predicated region
    $region26: #{tpu_custom_call.1} parent=1 // pred_check
      _
    $region27: #{tpu_custom_call.1} parent=1 // pred_check_branch
      %57 = sbr.rel (0) target = $region29
    $region28: #{tpu_custom_call.1} parent=1 // pred_region
      %58 = dma.done [#allocation6], 24576
    $region29: #{tpu_custom_call.1} parent=1 // pred_fallthru
      _
    // Predicated region
    $region30: #{tpu_custom_call.1} parent=1 // pred_check
      _
    $region31: #{tpu_custom_call.1} parent=1 // pred_check_branch
      %60 = sbr.rel (0) target = $region33
    $region32: #{tpu_custom_call.1} parent=1 // pred_region
      %61 = dma.done [#allocation6], 6144
    $region33: #{tpu_custom_call.1} parent=1 // pred_fallthru
      _
    %v62 = vld [vmem:[#allocation2] sm:$0xff]
    %v63 = vld [vmem:[#allocation2 + $0x8] sm:$0xff]
    %v64 = vld [vmem:[#allocation2 + $0x10] sm:$0xff]
    %v65 = vld [vmem:[#allocation2 + $0x18] sm:$0xff]
    %v66 = vld [vmem:[#allocation2 + $0x20] sm:$0xff]
    %v67 = vld [vmem:[#allocation2 + $0x28] sm:$0xff]
    %v68 = vld [vmem:[#allocation2 + $0x30] sm:$0xff]
    %v69 = vld [vmem:[#allocation2 + $0x38] sm:$0xff]
    %v70 = vld [vmem:[#allocation2 + $0x40] sm:$0xff]
    %v71 = vld [vmem:[#allocation2 + $0x48] sm:$0xff]
    %v72 = vld [vmem:[#allocation2 + $0x50] sm:$0xff]
    %v73 = vld [vmem:[#allocation2 + $0x58] sm:$0xff]
    %v74 = vld [vmem:[#allocation2 + $0x60] sm:$0xff]
    %v75 = vld [vmem:[#allocation2 + $0x68] sm:$0xff]
    %v76 = vld [vmem:[#allocation2 + $0x70] sm:$0xff]
    %v77 = vld [vmem:[#allocation2 + $0x78] sm:$0xff]
    %v78 = vld [vmem:[#allocation5] sm:$0xff]
    %v79 = vld [vmem:[#allocation5 + $0x8] sm:$0xff]
    %v80 = vld [vmem:[#allocation5 + $0x10] sm:$0xff]
    %v81 = vld [vmem:[#allocation5 + $0x18] sm:$0xff]
    %v82 = vld [vmem:[#allocation5 + $0x20] sm:$0xff]
    %v83 = vld [vmem:[#allocation5 + $0x28] sm:$0xff]
    %v84 = vld [vmem:[#allocation5 + $0x30] sm:$0xff]
    %v85 = vld [vmem:[#allocation5 + $0x38] sm:$0xff]
    %v86 = vld [vmem:[#allocation5 + $0x40] sm:$0xff]
    %v87 = vld [vmem:[#allocation5 + $0x48] sm:$0xff]
    %v88 = vld [vmem:[#allocation5 + $0x50] sm:$0xff]
    %v89 = vld [vmem:[#allocation5 + $0x58] sm:$0xff]
    %v90 = vld [vmem:[#allocation5 + $0x60] sm:$0xff]
    %v91 = vld [vmem:[#allocation5 + $0x68] sm:$0xff]
    %v92 = vld [vmem:[#allocation5 + $0x70] sm:$0xff]
    %v93 = vld [vmem:[#allocation5 + $0x78] sm:$0xff]
    %v94 = vld [vmem:[#allocation5 + $0x80] sm:$0xff]
    %v95 = vld [vmem:[#allocation5 + $0x88] sm:$0xff]
    %v96 = vld [vmem:[#allocation5 + $0x90] sm:$0xff]
    %v97 = vld [vmem:[#allocation5 + $0x98] sm:$0xff]
    %v98 = vld [vmem:[#allocation5 + $0xa0] sm:$0xff]
    %v99 = vld [vmem:[#allocation5 + $0xa8] sm:$0xff]
    %v100 = vld [vmem:[#allocation5 + $0xb0] sm:$0xff]
    %v101 = vld [vmem:[#allocation5 + $0xb8] sm:$0xff]
    %v102 = vld [vmem:[#allocation5 + $0xc0] sm:$0xff]
    %v103 = vld [vmem:[#allocation5 + $0xc8] sm:$0xff]
    %v104 = vld [vmem:[#allocation5 + $0xd0] sm:$0xff]
    %v105 = vld [vmem:[#allocation5 + $0xd8] sm:$0xff]
    %v106 = vld [vmem:[#allocation5 + $0xe0] sm:$0xff]
    %v107 = vld [vmem:[#allocation5 + $0xe8] sm:$0xff]
    %v108 = vld [vmem:[#allocation5 + $0xf0] sm:$0xff]
    %v109 = vld [vmem:[#allocation5 + $0xf8] sm:$0xff]
    %v110 = vld [vmem:[#allocation5 + $0x100] sm:$0xff]
    %v111 = vld [vmem:[#allocation5 + $0x108] sm:$0xff]
    %v112 = vld [vmem:[#allocation5 + $0x110] sm:$0xff]
    %v113 = vld [vmem:[#allocation5 + $0x118] sm:$0xff]
    %v114 = vld [vmem:[#allocation5 + $0x120] sm:$0xff]
    %v115 = vld [vmem:[#allocation5 + $0x128] sm:$0xff]
    %v116 = vld [vmem:[#allocation5 + $0x130] sm:$0xff]
    %v117 = vld [vmem:[#allocation5 + $0x138] sm:$0xff]
    %v118 = vld [vmem:[#allocation5 + $0x140] sm:$0xff]
    %v119 = vld [vmem:[#allocation5 + $0x148] sm:$0xff]
    %v120 = vld [vmem:[#allocation5 + $0x150] sm:$0xff]
    %v121 = vld [vmem:[#allocation5 + $0x158] sm:$0xff]
    %v122 = vld [vmem:[#allocation5 + $0x160] sm:$0xff]
    %v123 = vld [vmem:[#allocation5 + $0x168] sm:$0xff]
    %v124 = vld [vmem:[#allocation5 + $0x170] sm:$0xff]
    %v125 = vld [vmem:[#allocation5 + $0x178] sm:$0xff]
    %v126 = vld [vmem:[#allocation5 + $0x180] sm:$0xff]
    %v127 = vld [vmem:[#allocation5 + $0x188] sm:$0xff]
    %v128 = vld [vmem:[#allocation5 + $0x190] sm:$0xff]
    %v129 = vld [vmem:[#allocation5 + $0x198] sm:$0xff]
    %v130 = vld [vmem:[#allocation5 + $0x1a0] sm:$0xff]
    %v131 = vld [vmem:[#allocation5 + $0x1a8] sm:$0xff]
    %v132 = vld [vmem:[#allocation5 + $0x1b0] sm:$0xff]
    %v133 = vld [vmem:[#allocation5 + $0x1b8] sm:$0xff]
    %v134 = vld [vmem:[#allocation5 + $0x1c0] sm:$0xff]
    %v135 = vld [vmem:[#allocation5 + $0x1c8] sm:$0xff]
    %v136 = vld [vmem:[#allocation5 + $0x1d0] sm:$0xff]
    %v137 = vld [vmem:[#allocation5 + $0x1d8] sm:$0xff]
    %v138 = vld [vmem:[#allocation5 + $0x1e0] sm:$0xff]
    %v139 = vld [vmem:[#allocation5 + $0x1e8] sm:$0xff]
    %v140 = vld [vmem:[#allocation5 + $0x1f0] sm:$0xff]
    %v141 = vld [vmem:[#allocation5 + $0x1f8] sm:$0xff]
    %v142 = vld [vmem:[#allocation5 + $0x200] sm:$0xff]
    %v143 = vld [vmem:[#allocation5 + $0x208] sm:$0xff]
    %v144 = vld [vmem:[#allocation5 + $0x210] sm:$0xff]
    %v145 = vld [vmem:[#allocation5 + $0x218] sm:$0xff]
    %v146 = vld [vmem:[#allocation5 + $0x220] sm:$0xff]
    %v147 = vld [vmem:[#allocation5 + $0x228] sm:$0xff]
    %v148 = vld [vmem:[#allocation5 + $0x230] sm:$0xff]
    %v149 = vld [vmem:[#allocation5 + $0x238] sm:$0xff]
    %v150 = vld [vmem:[#allocation5 + $0x240] sm:$0xff]
    %v151 = vld [vmem:[#allocation5 + $0x248] sm:$0xff]
    %v152 = vld [vmem:[#allocation5 + $0x250] sm:$0xff]
    %v153 = vld [vmem:[#allocation5 + $0x258] sm:$0xff]
    %v154 = vld [vmem:[#allocation5 + $0x260] sm:$0xff]
    %v155 = vld [vmem:[#allocation5 + $0x268] sm:$0xff]
    %v156 = vld [vmem:[#allocation5 + $0x270] sm:$0xff]
    %v157 = vld [vmem:[#allocation5 + $0x278] sm:$0xff]
    %v158 = vld [vmem:[#allocation5 + $0x280] sm:$0xff]
    %v159 = vld [vmem:[#allocation5 + $0x288] sm:$0xff]
    %v160 = vld [vmem:[#allocation5 + $0x290] sm:$0xff]
    %v161 = vld [vmem:[#allocation5 + $0x298] sm:$0xff]
    %v162 = vld [vmem:[#allocation5 + $0x2a0] sm:$0xff]
    %v163 = vld [vmem:[#allocation5 + $0x2a8] sm:$0xff]
    %v164 = vld [vmem:[#allocation5 + $0x2b0] sm:$0xff]
    %v165 = vld [vmem:[#allocation5 + $0x2b8] sm:$0xff]
    %v166 = vld [vmem:[#allocation5 + $0x2c0] sm:$0xff]
    %v167 = vld [vmem:[#allocation5 + $0x2c8] sm:$0xff]
    %v168 = vld [vmem:[#allocation5 + $0x2d0] sm:$0xff]
    %v169 = vld [vmem:[#allocation5 + $0x2d8] sm:$0xff]
    %v170 = vld [vmem:[#allocation5 + $0x2e0] sm:$0xff]
    %v171 = vld [vmem:[#allocation5 + $0x2e8] sm:$0xff]
    %v172 = vld [vmem:[#allocation5 + $0x2f0] sm:$0xff]
    %v173 = vld [vmem:[#allocation5 + $0x2f8] sm:$0xff]
    %v174 = vld [vmem:[#allocation5 + $0x300] sm:$0xff]
    %v175 = vld [vmem:[#allocation5 + $0x308] sm:$0xff]
    %v176 = vld [vmem:[#allocation5 + $0x310] sm:$0xff]
    %v177 = vld [vmem:[#allocation5 + $0x318] sm:$0xff]
    %v178 = vld [vmem:[#allocation5 + $0x320] sm:$0xff]
    %v179 = vld [vmem:[#allocation5 + $0x328] sm:$0xff]
    %v180 = vld [vmem:[#allocation5 + $0x330] sm:$0xff]
    %v181 = vld [vmem:[#allocation5 + $0x338] sm:$0xff]
    %v182 = vld [vmem:[#allocation5 + $0x340] sm:$0xff]
    %v183 = vld [vmem:[#allocation5 + $0x348] sm:$0xff]
    %v184 = vld [vmem:[#allocation5 + $0x350] sm:$0xff]
    %v185 = vld [vmem:[#allocation5 + $0x358] sm:$0xff]
    %v186 = vld [vmem:[#allocation5 + $0x360] sm:$0xff]
    %v187 = vld [vmem:[#allocation5 + $0x368] sm:$0xff]
    %v188 = vld [vmem:[#allocation5 + $0x370] sm:$0xff]
    %v189 = vld [vmem:[#allocation5 + $0x378] sm:$0xff]
    %v190 = vld [vmem:[#allocation5 + $0x380] sm:$0xff]
    %v191 = vld [vmem:[#allocation5 + $0x388] sm:$0xff]
    %v192 = vld [vmem:[#allocation5 + $0x390] sm:$0xff]
    %v193 = vld [vmem:[#allocation5 + $0x398] sm:$0xff]
    %v194 = vld [vmem:[#allocation5 + $0x3a0] sm:$0xff]
    %v195 = vld [vmem:[#allocation5 + $0x3a8] sm:$0xff]
    %v196 = vld [vmem:[#allocation5 + $0x3b0] sm:$0xff]
    %v197 = vld [vmem:[#allocation5 + $0x3b8] sm:$0xff]
    %v198 = vld [vmem:[#allocation5 + $0x3c0] sm:$0xff]
    %v199 = vld [vmem:[#allocation5 + $0x3c8] sm:$0xff]
    %v200 = vld [vmem:[#allocation5 + $0x3d0] sm:$0xff]
    %v201 = vld [vmem:[#allocation5 + $0x3d8] sm:$0xff]
    %v202 = vld [vmem:[#allocation5 + $0x3e0] sm:$0xff]
    %v203 = vld [vmem:[#allocation5 + $0x3e8] sm:$0xff]
    %v204 = vld [vmem:[#allocation5 + $0x3f0] sm:$0xff]
    %v205 = vld [vmem:[#allocation5 + $0x3f8] sm:$0xff]
    %v206 = vld [vmem:[#allocation5 + $0x400] sm:$0xff]
    %v207 = vld [vmem:[#allocation5 + $0x408] sm:$0xff]
    %v208 = vld [vmem:[#allocation5 + $0x410] sm:$0xff]
    %v209 = vld [vmem:[#allocation5 + $0x418] sm:$0xff]
    %v210 = vld [vmem:[#allocation5 + $0x420] sm:$0xff]
    %v211 = vld [vmem:[#allocation5 + $0x428] sm:$0xff]
    %v212 = vld [vmem:[#allocation5 + $0x430] sm:$0xff]
    %v213 = vld [vmem:[#allocation5 + $0x438] sm:$0xff]
    %v214 = vld [vmem:[#allocation5 + $0x440] sm:$0xff]
    %v215 = vld [vmem:[#allocation5 + $0x448] sm:$0xff]
    %v216 = vld [vmem:[#allocation5 + $0x450] sm:$0xff]
    %v217 = vld [vmem:[#allocation5 + $0x458] sm:$0xff]
    %v218 = vld [vmem:[#allocation5 + $0x460] sm:$0xff]
    %v219 = vld [vmem:[#allocation5 + $0x468] sm:$0xff]
    %v220 = vld [vmem:[#allocation5 + $0x470] sm:$0xff]
    %v221 = vld [vmem:[#allocation5 + $0x478] sm:$0xff]
    %v222 = vld [vmem:[#allocation5 + $0x480] sm:$0xff]
    %v223 = vld [vmem:[#allocation5 + $0x488] sm:$0xff]
    %v224 = vld [vmem:[#allocation5 + $0x490] sm:$0xff]
    %v225 = vld [vmem:[#allocation5 + $0x498] sm:$0xff]
    %v226 = vld [vmem:[#allocation5 + $0x4a0] sm:$0xff]
    %v227 = vld [vmem:[#allocation5 + $0x4a8] sm:$0xff]
    %v228 = vld [vmem:[#allocation5 + $0x4b0] sm:$0xff]
    %v229 = vld [vmem:[#allocation5 + $0x4b8] sm:$0xff]
    %v230 = vld [vmem:[#allocation5 + $0x4c0] sm:$0xff]
    %v231 = vld [vmem:[#allocation5 + $0x4c8] sm:$0xff]
    %v232 = vld [vmem:[#allocation5 + $0x4d0] sm:$0xff]
    %v233 = vld [vmem:[#allocation5 + $0x4d8] sm:$0xff]
    %v234 = vld [vmem:[#allocation5 + $0x4e0] sm:$0xff]
    %v235 = vld [vmem:[#allocation5 + $0x4e8] sm:$0xff]
    %v236 = vld [vmem:[#allocation5 + $0x4f0] sm:$0xff]
    %v237 = vld [vmem:[#allocation5 + $0x4f8] sm:$0xff]
    %v238 = vld [vmem:[#allocation5 + $0x500] sm:$0xff]
    %v239 = vld [vmem:[#allocation5 + $0x508] sm:$0xff]
    %v240 = vld [vmem:[#allocation5 + $0x510] sm:$0xff]
    %v241 = vld [vmem:[#allocation5 + $0x518] sm:$0xff]
    %v242 = vld [vmem:[#allocation5 + $0x520] sm:$0xff]
    %v243 = vld [vmem:[#allocation5 + $0x528] sm:$0xff]
    %v244 = vld [vmem:[#allocation5 + $0x530] sm:$0xff]
    %v245 = vld [vmem:[#allocation5 + $0x538] sm:$0xff]
    %v246 = vld [vmem:[#allocation5 + $0x540] sm:$0xff]
    %v247 = vld [vmem:[#allocation5 + $0x548] sm:$0xff]
    %v248 = vld [vmem:[#allocation5 + $0x550] sm:$0xff]
    %v249 = vld [vmem:[#allocation5 + $0x558] sm:$0xff]
    %v250 = vld [vmem:[#allocation5 + $0x560] sm:$0xff]
    %v251 = vld [vmem:[#allocation5 + $0x568] sm:$0xff]
    %v252 = vld [vmem:[#allocation5 + $0x570] sm:$0xff]
    %v253 = vld [vmem:[#allocation5 + $0x578] sm:$0xff]
    %v254 = vld [vmem:[#allocation5 + $0x580] sm:$0xff]
    %v255 = vld [vmem:[#allocation5 + $0x588] sm:$0xff]
    %v256 = vld [vmem:[#allocation5 + $0x590] sm:$0xff]
    %v257 = vld [vmem:[#allocation5 + $0x598] sm:$0xff]
    %v258 = vld [vmem:[#allocation5 + $0x5a0] sm:$0xff]
    %v259 = vld [vmem:[#allocation5 + $0x5a8] sm:$0xff]
    %v260 = vld [vmem:[#allocation5 + $0x5b0] sm:$0xff]
    %v261 = vld [vmem:[#allocation5 + $0x5b8] sm:$0xff]
    %v262 = vld [vmem:[#allocation5 + $0x5c0] sm:$0xff]
    %v263 = vld [vmem:[#allocation5 + $0x5c8] sm:$0xff]
    %v264 = vld [vmem:[#allocation5 + $0x5d0] sm:$0xff]
    %v265 = vld [vmem:[#allocation5 + $0x5d8] sm:$0xff]
    %v266 = vld [vmem:[#allocation5 + $0x5e0] sm:$0xff]
    %v267 = vld [vmem:[#allocation5 + $0x5e8] sm:$0xff]
    %v268 = vld [vmem:[#allocation5 + $0x5f0] sm:$0xff]
    %v269 = vld [vmem:[#allocation5 + $0x5f8] sm:$0xff]
    %270 = vmatprep.subr.mxu0 %v79
    %271 = vmatpush1.msra.mxu0 %v78
    %272 = vmatprep.subr.mxu0 %v91
    %273 = vmatpush1.msra.mxu0 %v90
    %274 = vmatprep.subr.mxu0 %v103
    %275 = vmatpush1.msra.mxu0 %v102
    %276 = vmatprep.subr.mxu0 %v115
    %277 = vmatpush1.msra.mxu0 %v114
    %278 = vmatprep.subr.mxu0 %v127
    %279 = vmatpush1.msra.mxu0 %v126
    %280 = vmatprep.subr.mxu0 %v139
    %281 = vmatpush1.msra.mxu0 %v138
    %282 = vmatprep.subr.mxu0 %v151
    %283 = vmatpush1.msra.mxu0 %v150
    %284 = vmatprep.subr.mxu0 %v163
    %285 = vmatpush1.msra.mxu0 %v162
    %286 = vmatprep.subr.mxu0 %v175
    %287 = vmatpush1.msra.mxu0 %v174
    %288 = vmatprep.subr.mxu0 %v187
    %289 = vmatpush1.msra.mxu0 %v186
    %290 = vmatprep.subr.mxu0 %v199
    %291 = vmatpush1.msra.mxu0 %v198
    %292 = vmatprep.subr.mxu0 %v211
    %293 = vmatpush1.msra.mxu0 %v210
    %294 = vmatprep.subr.mxu0 %v223
    %295 = vmatpush1.msra.mxu0 %v222
    %296 = vmatprep.subr.mxu0 %v235
    %297 = vmatpush1.msra.mxu0 %v234
    %298 = vmatprep.subr.mxu0 %v247
    %299 = vmatpush1.msra.mxu0 %v246
    %300 = vmatprep.subr.mxu0 %v259
    %301 = vmatpush1.msra.mxu0 %v258
    %302 = vmatprep.subr.mxu0 0.0
    %303 = vmatpush1.msra.mxu0 0.0
    %304 = vmatprep.subr.mxu0 0.0
    %305 = vmatpush1.msra.mxu0 0.0
    %306 = vmatprep.subr.mxu0 0.0
    %307 = vmatpush1.msra.mxu0 0.0
    %308 = vmatprep.subr.mxu0 0.0
    %309 = vmatpush1.msra.mxu0 0.0
    %310 = vmatprep.subr.mxu0 0.0
    %311 = vmatpush1.msra.mxu0 0.0
    %312 = vmatprep.subr.mxu0 0.0
    %313 = vmatpush1.msra.mxu0 0.0
    %314 = vmatprep.subr.mxu0 0.0
    %315 = vmatpush1.msra.mxu0 0.0
    %316 = vmatprep.subr.mxu0 0.0
    %317 = vmatpush1.msra.mxu0 0.0
    %318 = vmatprep.subr.mxu0 0.0
    %319 = vmatpush1.msra.mxu0 0.0
    %320 = vmatprep.subr.mxu0 0.0
    %321 = vmatpush1.msra.mxu0 0.0
    %322 = vmatprep.subr.mxu0 0.0
    %323 = vmatpush1.msra.mxu0 0.0
    %324 = vmatprep.subr.mxu0 0.0
    %325 = vmatpush1.msra.mxu0 0.0
    %326 = vmatprep.subr.mxu0 0.0
    %327 = vmatpush1.msra.mxu0 0.0
    %328 = vmatprep.subr.mxu0 0.0
    %329 = vmatpush1.msra.mxu0 0.0
    %330 = vmatprep.subr.mxu0 0.0
    %331 = vmatpush1.msra.mxu0 0.0
    %332 = vmatprep.subr.mxu0 0.0
    %333 = vmatpush1.msra.mxu0 0.0
    %334 = vmatprep.mubr.f32.mxu0 0.0
    %335 = vmatmul.mubr.f32.gmra.mrb[0].mxu0 %v62
    %v336 = vpop.f32.mrb[0].mxu0
    %v337 = vadd.f32 0.0, %v336
    %v338 = vpop.f32.mrb[0].mxu0
    %v339 = vadd.f32 0.0, %v338
    %340 = vmatprep.mubr.f32.mxu0 0.0
    %341 = vmatmul.mubr.f32.gmra.mrb[0].mxu0 %v63
    %v342 = vpop.f32.mrb[0].mxu0
    %v343 = vadd.f32 0.0, %v342
    %v344 = vpop.f32.mrb[0].mxu0
    %v345 = vadd.f32 0.0, %v344
    %346 = vmatprep.mubr.f32.mxu0 0.0
    %347 = vmatmul.mubr.f32.gmra.mrb[0].mxu0 %v64
    %v348 = vpop.f32.mrb[0].mxu0
    %v349 = vadd.f32 0.0, %v348
    %v350 = vpop.f32.mrb[0].mxu0
    %v351 = vadd.f32 0.0, %v350
    %352 = vmatprep.mubr.f32.mxu0 0.0
    %353 = vmatmul.mubr.f32.gmra.mrb[0].mxu0 %v65
    %v354 = vpop.f32.mrb[0].mxu0
    %v355 = vadd.f32 0.0, %v354
    %v356 = vpop.f32.mrb[0].mxu0
    %v357 = vadd.f32 0.0, %v356
    %358 = vmatprep.mubr.f32.mxu0 0.0
    %359 = vmatmul.mubr.f32.gmra.mrb[0].mxu0 %v66
    %v360 = vpop.f32.mrb[0].mxu0
    %v361 = vadd.f32 0.0, %v360
    %v362 = vpop.f32.mrb[0].mxu0
    %v363 = vadd.f32 0.0, %v362
    %364 = vmatprep.mubr.f32.mxu0 0.0
    %365 = vmatmul.mubr.f32.gmra.mrb[0].mxu0 %v67
    %v366 = vpop.f32.mrb[0].mxu0
    %v367 = vadd.f32 0.0, %v366
    %v368 = vpop.f32.mrb[0].mxu0
    %v369 = vadd.f32 0.0, %v368
    %370 = vmatprep.mubr.f32.mxu0 0.0
    %371 = vmatmul.mubr.f32.gmra.mrb[0].mxu0 %v68
    %v372 = vpop.f32.mrb[0].mxu0
    %v373 = vadd.f32 0.0, %v372
    %v374 = vpop.f32.mrb[0].mxu0
    %v375 = vadd.f32 0.0, %v374
    %376 = vmatprep.mubr.f32.mxu0 0.0
    %377 = vmatmul.mubr.f32.gmra.mrb[0].mxu0 %v69
    %v378 = vpop.f32.mrb[0].mxu0
    %v379 = vadd.f32 0.0, %v378
    %v380 = vpop.f32.mrb[0].mxu0
    %v381 = vadd.f32 0.0, %v380
    %382 = vmatprep.mubr.f32.mxu0 0.0
    %383 = vmatmul.mubr.f32.gmra.mrb[0].mxu0 %v70
    %v384 = vpop.f32.mrb[0].mxu0
    %v385 = vadd.f32 0.0, %v384
    %v386 = vpop.f32.mrb[0].mxu0
    %v387 = vadd.f32 0.0, %v386
    %388 = vmatprep.mubr.f32.mxu0 0.0
    %389 = vmatmul.mubr.f32.gmra.mrb[0].mxu0 %v71
    %v390 = vpop.f32.mrb[0].mxu0
    %v391 = vadd.f32 0.0, %v390
    %v392 = vpop.f32.mrb[0].mxu0
    %v393 = vadd.f32 0.0, %v392
    %394 = vmatprep.mubr.f32.mxu0 0.0
    %395 = vmatmul.mubr.f32.gmra.mrb[0].mxu0 %v72
    %v396 = vpop.f32.mrb[0].mxu0
    %v397 = vadd.f32 0.0, %v396
    %v398 = vpop.f32.mrb[0].mxu0
    %v399 = vadd.f32 0.0, %v398
    %400 = vmatprep.mubr.f32.mxu0 0.0
    %401 = vmatmul.mubr.f32.gmra.mrb[0].mxu0 %v73
    %v402 = vpop.f32.mrb[0].mxu0
    %v403 = vadd.f32 0.0, %v402
    %v404 = vpop.f32.mrb[0].mxu0
    %v405 = vadd.f32 0.0, %v404
    %406 = vmatprep.mubr.f32.mxu0 0.0
    %407 = vmatmul.mubr.f32.gmra.mrb[0].mxu0 %v74
    %v408 = vpop.f32.mrb[0].mxu0
    %v409 = vadd.f32 0.0, %v408
    %v410 = vpop.f32.mrb[0].mxu0
    %v411 = vadd.f32 0.0, %v410
    %412 = vmatprep.mubr.f32.mxu0 0.0
    %413 = vmatmul.mubr.f32.gmra.mrb[0].mxu0 %v75
    %v414 = vpop.f32.mrb[0].mxu0
    %v415 = vadd.f32 0.0, %v414
    %v416 = vpop.f32.mrb[0].mxu0
    %v417 = vadd.f32 0.0, %v416
    %418 = vmatprep.mubr.f32.mxu0 0.0
    %419 = vmatmul.mubr.f32.gmra.mrb[0].mxu0 %v76
    %v420 = vpop.f32.mrb[0].mxu0
    %v421 = vadd.f32 0.0, %v420
    %v422 = vpop.f32.mrb[0].mxu0
    %v423 = vadd.f32 0.0, %v422
    %424 = vmatprep.mubr.f32.mxu0 0.0
    %425 = vmatmul.mubr.f32.gmra.mrb[0].mxu0 %v77
    %v426 = vpop.f32.mrb[0].mxu0
    %v427 = vadd.f32 0.0, %v426
    %v428 = vpop.f32.mrb[0].mxu0
    %v429 = vadd.f32 0.0, %v428
    %430 = vdwg.mxu0
    %431 = vmatprep.subr.mxu0 %v81
    %432 = vmatpush1.msra.mxu0 %v80
    %433 = vmatprep.subr.mxu0 %v93
    %434 = vmatpush1.msra.mxu0 %v92
    %435 = vmatprep.subr.mxu0 %v105
    %436 = vmatpush1.msra.mxu0 %v104
    %437 = vmatprep.subr.mxu0 %v117
    %438 = vmatpush1.msra.mxu0 %v116
    %439 = vmatprep.subr.mxu0 %v129
    %440 = vmatpush1.msra.mxu0 %v128
    %441 = vmatprep.subr.mxu0 %v141
    %442 = vmatpush1.msra.mxu0 %v140
    %443 = vmatprep.subr.mxu0 %v153
    %444 = vmatpush1.msra.mxu0 %v152
    %445 = vmatprep.subr.mxu0 %v165
    %446 = vmatpush1.msra.mxu0 %v164
    %447 = vmatprep.subr.mxu0 %v177
    %448 = vmatpush1.msra.mxu0 %v176
    %449 = vmatprep.subr.mxu0 %v189
    %450 = vmatpush1.msra.mxu0 %v188
    %451 = vmatprep.subr.mxu0 %v201
    %452 = vmatpush1.msra.mxu0 %v200
    %453 = vmatprep.subr.mxu0 %v213
    %454 = vmatpush1.msra.mxu0 %v212
    %455 = vmatprep.subr.mxu0 %v225
    %456 = vmatpush1.msra.mxu0 %v224
    %457 = vmatprep.subr.mxu0 %v237
    %458 = vmatpush1.msra.mxu0 %v236
    %459 = vmatprep.subr.mxu0 %v249
    %460 = vmatpush1.msra.mxu0 %v248
    %461 = vmatprep.subr.mxu0 %v261
    %462 = vmatpush1.msra.mxu0 %v260
    %463 = vmatprep.subr.mxu0 0.0
    %464 = vmatpush1.msra.mxu0 0.0
    %465 = vmatprep.subr.mxu0 0.0
    %466 = vmatpush1.msra.mxu0 0.0
    %467 = vmatprep.subr.mxu0 0.0
    %468 = vmatpush1.msra.mxu0 0.0
    %469 = vmatprep.subr.mxu0 0.0
    %470 = vmatpush1.msra.mxu0 0.0
    %471 = vmatprep.subr.mxu0 0.0
    %472 = vmatpush1.msra.mxu0 0.0
    %473 = vmatprep.subr.mxu0 0.0
    %474 = vmatpush1.msra.mxu0 0.0
    %475 = vmatprep.subr.mxu0 0.0
    %476 = vmatpush1.msra.mxu0 0.0
    %477 = vmatprep.subr.mxu0 0.0
    %478 = vmatpush1.msra.mxu0 0.0
    %479 = vmatprep.subr.mxu0 0.0
    %480 = vmatpush1.msra.mxu0 0.0
    %481 = vmatprep.subr.mxu0 0.0
    %482 = vmatpush1.msra.mxu0 0.0
    %483 = vmatprep.subr.mxu0 0.0
    %484 = vmatpush1.msra.mxu0 0.0
    %485 = vmatprep.subr.mxu0 0.0
    %486 = vmatpush1.msra.mxu0 0.0
    %487 = vmatprep.subr.mxu0 0.0
    %488 = vmatpush1.msra.mxu0 0.0
    %489 = vmatprep.subr.mxu0 0.0
    %490 = vmatpush1.msra.mxu0 0.0
    %491 = vmatprep.subr.mxu0 0.0
    %492 = vmatpush1.msra.mxu0 0.0
    %493 = vmatprep.subr.mxu0 0.0
    %494 = vmatpush1.msra.mxu0 0.0
    %495 = vmatprep.mubr.f32.mxu0 0.0
    %496 = vmatmul.mubr.f32.gmra.mrb[0].mxu0 %v62
    %v497 = vpop.f32.mrb[0].mxu0
    %v498 = vadd.f32 0.0, %v497
    %v499 = vpop.f32.mrb[0].mxu0
    %v500 = vadd.f32 0.0, %v499
    %501 = vmatprep.mubr.f32.mxu0 0.0
    %502 = vmatmul.mubr.f32.gmra.mrb[0].mxu0 %v63
    %v503 = vpop.f32.mrb[0].mxu0
    %v504 = vadd.f32 0.0, %v503
    %v505 = vpop.f32.mrb[0].mxu0
    %v506 = vadd.f32 0.0, %v505
    %507 = vmatprep.mubr.f32.mxu0 0.0
    %508 = vmatmul.mubr.f32.gmra.mrb[0].mxu0 %v64
    %v509 = vpop.f32.mrb[0].mxu0
    %v510 = vadd.f32 0.0, %v509
    %v511 = vpop.f32.mrb[0].mxu0
    %v512 = vadd.f32 0.0, %v511
    %513 = vmatprep.mubr.f32.mxu0 0.0
    %514 = vmatmul.mubr.f32.gmra.mrb[0].mxu0 %v65
    %v515 = vpop.f32.mrb[0].mxu0
    %v516 = vadd.f32 0.0, %v515
    %v517 = vpop.f32.mrb[0].mxu0
    %v518 = vadd.f32 0.0, %v517
    %519 = vmatprep.mubr.f32.mxu0 0.0
    %520 = vmatmul.mubr.f32.gmra.mrb[0].mxu0 %v66
    %v521 = vpop.f32.mrb[0].mxu0
    %v522 = vadd.f32 0.0, %v521
    %v523 = vpop.f32.mrb[0].mxu0
    %v524 = vadd.f32 0.0, %v523
    %525 = vmatprep.mubr.f32.mxu0 0.0
    %526 = vmatmul.mubr.f32.gmra.mrb[0].mxu0 %v67
    %v527 = vpop.f32.mrb[0].mxu0
    %v528 = vadd.f32 0.0, %v527
    %v529 = vpop.f32.mrb[0].mxu0
    %v530 = vadd.f32 0.0, %v529
    %531 = vmatprep.mubr.f32.mxu0 0.0
    %532 = vmatmul.mubr.f32.gmra.mrb[0].mxu0 %v68
    %v533 = vpop.f32.mrb[0].mxu0
    %v534 = vadd.f32 0.0, %v533
    %v535 = vpop.f32.mrb[0].mxu0
    %v536 = vadd.f32 0.0, %v535
    %537 = vmatprep.mubr.f32.mxu0 0.0
    %538 = vmatmul.mubr.f32.gmra.mrb[0].mxu0 %v69
    %v539 = vpop.f32.mrb[0].mxu0
    %v540 = vadd.f32 0.0, %v539
    %v541 = vpop.f32.mrb[0].mxu0
    %v542 = vadd.f32 0.0, %v541
    %543 = vmatprep.mubr.f32.mxu0 0.0
    %544 = vmatmul.mubr.f32.gmra.mrb[0].mxu0 %v70
    %v545 = vpop.f32.mrb[0].mxu0
    %v546 = vadd.f32 0.0, %v545
    %v547 = vpop.f32.mrb[0].mxu0
    %v548 = vadd.f32 0.0, %v547
    %549 = vmatprep.mubr.f32.mxu0 0.0
    %550 = vmatmul.mubr.f32.gmra.mrb[0].mxu0 %v71
    %v551 = vpop.f32.mrb[0].mxu0
    %v552 = vadd.f32 0.0, %v551
    %v553 = vpop.f32.mrb[0].mxu0
    %v554 = vadd.f32 0.0, %v553
    %555 = vmatprep.mubr.f32.mxu0 0.0
    %556 = vmatmul.mubr.f32.gmra.mrb[0].mxu0 %v72
    %v557 = vpop.f32.mrb[0].mxu0
    %v558 = vadd.f32 0.0, %v557
    %v559 = vpop.f32.mrb[0].mxu0
    %v560 = vadd.f32 0.0, %v559
    %561 = vmatprep.mubr.f32.mxu0 0.0
    %562 = vmatmul.mubr.f32.gmra.mrb[0].mxu0 %v73
    %v563 = vpop.f32.mrb[0].mxu0
    %v564 = vadd.f32 0.0, %v563
    %v565 = vpop.f32.mrb[0].mxu0
    %v566 = vadd.f32 0.0, %v565
    %567 = vmatprep.mubr.f32.mxu0 0.0
    %568 = vmatmul.mubr.f32.gmra.mrb[0].mxu0 %v74
    %v569 = vpop.f32.mrb[0].mxu0
    %v570 = vadd.f32 0.0, %v569
    %v571 = vpop.f32.mrb[0].mxu0
    %v572 = vadd.f32 0.0, %v571
    %573 = vmatprep.mubr.f32.mxu0 0.0
    %574 = vmatmul.mubr.f32.gmra.mrb[0].mxu0 %v75
    %v575 = vpop.f32.mrb[0].mxu0
    %v576 = vadd.f32 0.0, %v575
    %v577 = vpop.f32.mrb[0].mxu0
    %v578 = vadd.f32 0.0, %v577
    %579 = vmatprep.mubr.f32.mxu0 0.0
    %580 = vmatmul.mubr.f32.gmra.mrb[0].mxu0 %v76
    %v581 = vpop.f32.mrb[0].mxu0
    %v582 = vadd.f32 0.0, %v581
    %v583 = vpop.f32.mrb[0].mxu0
    %v584 = vadd.f32 0.0, %v583
    %585 = vmatprep.mubr.f32.mxu0 0.0
    %586 = vmatmul.mubr.f32.gmra.mrb[0].mxu0 %v77
    %v587 = vpop.f32.mrb[0].mxu0
    %v588 = vadd.f32 0.0, %v587
    %v589 = vpop.f32.mrb[0].mxu0
    %v590 = vadd.f32 0.0, %v589
    %591 = vdwg.mxu0
    %592 = vmatprep.subr.mxu0 %v83
    %593 = vmatpush1.msra.mxu0 %v82
    %594 = vmatprep.subr.mxu0 %v95
    %595 = vmatpush1.msra.mxu0 %v94
    %596 = vmatprep.subr.mxu0 %v107
    %597 = vmatpush1.msra.mxu0 %v106
    %598 = vmatprep.subr.mxu0 %v119
    %599 = vmatpush1.msra.mxu0 %v118
    %600 = vmatprep.subr.mxu0 %v131
    %601 = vmatpush1.msra.mxu0 %v130
    %602 = vmatprep.subr.mxu0 %v143
    %603 = vmatpush1.msra.mxu0 %v142
    %604 = vmatprep.subr.mxu0 %v155
    %605 = vmatpush1.msra.mxu0 %v154
    %606 = vmatprep.subr.mxu0 %v167
    %607 = vmatpush1.msra.mxu0 %v166
    %608 = vmatprep.subr.mxu0 %v179
    %609 = vmatpush1.msra.mxu0 %v178
    %610 = vmatprep.subr.mxu0 %v191
    %611 = vmatpush1.msra.mxu0 %v190
    %612 = vmatprep.subr.mxu0 %v203
    %613 = vmatpush1.msra.mxu0 %v202
    %614 = vmatprep.subr.mxu0 %v215
    %615 = vmatpush1.msra.mxu0 %v214
    %616 = vmatprep.subr.mxu0 %v227
    %617 = vmatpush1.msra.mxu0 %v226
    %618 = vmatprep.subr.mxu0 %v239
    %619 = vmatpush1.msra.mxu0 %v238
    %620 = vmatprep.subr.mxu0 %v251
    %621 = vmatpush1.msra.mxu0 %v250
    %622 = vmatprep.subr.mxu0 %v263
    %623 = vmatpush1.msra.mxu0 %v262
    %624 = vmatprep.subr.mxu0 0.0
    %625 = vmatpush1.msra.mxu0 0.0
    %626 = vmatprep.subr.mxu0 0.0
    %627 = vmatpush1.msra.mxu0 0.0
    %628 = vmatprep.subr.mxu0 0.0
    %629 = vmatpush1.msra.mxu0 0.0
    %630 = vmatprep.subr.mxu0 0.0
    %631 = vmatpush1.msra.mxu0 0.0
    %632 = vmatprep.subr.mxu0 0.0
    %633 = vmatpush1.msra.mxu0 0.0
    %634 = vmatprep.subr.mxu0 0.0
    %635 = vmatpush1.msra.mxu0 0.0
    %636 = vmatprep.subr.mxu0 0.0
    %637 = vmatpush1.msra.mxu0 0.0
    %638 = vmatprep.subr.mxu0 0.0
    %639 = vmatpush1.msra.mxu0 0.0
    %640 = vmatprep.subr.mxu0 0.0
    %641 = vmatpush1.msra.mxu0 0.0
    %642 = vmatprep.subr.mxu0 0.0
    %643 = vmatpush1.msra.mxu0 0.0
    %644 = vmatprep.subr.mxu0 0.0
    %645 = vmatpush1.msra.mxu0 0.0
    %646 = vmatprep.subr.mxu0 0.0
    %647 = vmatpush1.msra.mxu0 0.0
    %648 = vmatprep.subr.mxu0 0.0
    %649 = vmatpush1.msra.mxu0 0.0
    %650 = vmatprep.subr.mxu0 0.0
    %651 = vmatpush1.msra.mxu0 0.0
    %652 = vmatprep.subr.mxu0 0.0
    %653 = vmatpush1.msra.mxu0 0.0
    %654 = vmatprep.subr.mxu0 0.0
    %655 = vmatpush1.msra.mxu0 0.0
    %656 = vmatprep.mubr.f32.mxu0 0.0
    %657 = vmatmul.mubr.f32.gmra.mrb[0].mxu0 %v62
    %v658 = vpop.f32.mrb[0].mxu0
    %v659 = vadd.f32 0.0, %v658
    %v660 = vpop.f32.mrb[0].mxu0
    %v661 = vadd.f32 0.0, %v660
    %662 = vmatprep.mubr.f32.mxu0 0.0
    %663 = vmatmul.mubr.f32.gmra.mrb[0].mxu0 %v63
    %v664 = vpop.f32.mrb[0].mxu0
    %v665 = vadd.f32 0.0, %v664
    %v666 = vpop.f32.mrb[0].mxu0
    %v667 = vadd.f32 0.0, %v666
    %668 = vmatprep.mubr.f32.mxu0 0.0
    %669 = vmatmul.mubr.f32.gmra.mrb[0].mxu0 %v64
    %v670 = vpop.f32.mrb[0].mxu0
    %v671 = vadd.f32 0.0, %v670
    %v672 = vpop.f32.mrb[0].mxu0
    %v673 = vadd.f32 0.0, %v672
    %674 = vmatprep.mubr.f32.mxu0 0.0
    %675 = vmatmul.mubr.f32.gmra.mrb[0].mxu0 %v65
    %v676 = vpop.f32.mrb[0].mxu0
    %v677 = vadd.f32 0.0, %v676
    %v678 = vpop.f32.mrb[0].mxu0
    %v679 = vadd.f32 0.0, %v678
    %680 = vmatprep.mubr.f32.mxu0 0.0
    %681 = vmatmul.mubr.f32.gmra.mrb[0].mxu0 %v66
    %v682 = vpop.f32.mrb[0].mxu0
    %v683 = vadd.f32 0.0, %v682
    %v684 = vpop.f32.mrb[0].mxu0
    %v685 = vadd.f32 0.0, %v684
    %686 = vmatprep.mubr.f32.mxu0 0.0
    %687 = vmatmul.mubr.f32.gmra.mrb[0].mxu0 %v67
    %v688 = vpop.f32.mrb[0].mxu0
    %v689 = vadd.f32 0.0, %v688
    %v690 = vpop.f32.mrb[0].mxu0
    %v691 = vadd.f32 0.0, %v690
    %692 = vmatprep.mubr.f32.mxu0 0.0
    %693 = vmatmul.mubr.f32.gmra.mrb[0].mxu0 %v68
    %v694 = vpop.f32.mrb[0].mxu0
    %v695 = vadd.f32 0.0, %v694
    %v696 = vpop.f32.mrb[0].mxu0
    %v697 = vadd.f32 0.0, %v696
    %698 = vmatprep.mubr.f32.mxu0 0.0
    %699 = vmatmul.mubr.f32.gmra.mrb[0].mxu0 %v69
    %v700 = vpop.f32.mrb[0].mxu0
    %v701 = vadd.f32 0.0, %v700
    %v702 = vpop.f32.mrb[0].mxu0
    %v703 = vadd.f32 0.0, %v702
    %704 = vmatprep.mubr.f32.mxu0 0.0
    %705 = vmatmul.mubr.f32.gmra.mrb[0].mxu0 %v70
    %v706 = vpop.f32.mrb[0].mxu0
    %v707 = vadd.f32 0.0, %v706
    %v708 = vpop.f32.mrb[0].mxu0
    %v709 = vadd.f32 0.0, %v708
    %710 = vmatprep.mubr.f32.mxu0 0.0
    %711 = vmatmul.mubr.f32.gmra.mrb[0].mxu0 %v71
    %v712 = vpop.f32.mrb[0].mxu0
    %v713 = vadd.f32 0.0, %v712
    %v714 = vpop.f32.mrb[0].mxu0
    %v715 = vadd.f32 0.0, %v714
    %716 = vmatprep.mubr.f32.mxu0 0.0
    %717 = vmatmul.mubr.f32.gmra.mrb[0].mxu0 %v72
    %v718 = vpop.f32.mrb[0].mxu0
    %v719 = vadd.f32 0.0, %v718
    %v720 = vpop.f32.mrb[0].mxu0
    %v721 = vadd.f32 0.0, %v720
    %722 = vmatprep.mubr.f32.mxu0 0.0
    %723 = vmatmul.mubr.f32.gmra.mrb[0].mxu0 %v73
    %v724 = vpop.f32.mrb[0].mxu0
    %v725 = vadd.f32 0.0, %v724
    %v726 = vpop.f32.mrb[0].mxu0
    %v727 = vadd.f32 0.0, %v726
    %728 = vmatprep.mubr.f32.mxu0 0.0
    %729 = vmatmul.mubr.f32.gmra.mrb[0].mxu0 %v74
    %v730 = vpop.f32.mrb[0].mxu0
    %v731 = vadd.f32 0.0, %v730
    %v732 = vpop.f32.mrb[0].mxu0
    %v733 = vadd.f32 0.0, %v732
    %734 = vmatprep.mubr.f32.mxu0 0.0
    %735 = vmatmul.mubr.f32.gmra.mrb[0].mxu0 %v75
    %v736 = vpop.f32.mrb[0].mxu0
    %v737 = vadd.f32 0.0, %v736
    %v738 = vpop.f32.mrb[0].mxu0
    %v739 = vadd.f32 0.0, %v738
    %740 = vmatprep.mubr.f32.mxu0 0.0
    %741 = vmatmul.mubr.f32.gmra.mrb[0].mxu0 %v76
    %v742 = vpop.f32.mrb[0].mxu0
    %v743 = vadd.f32 0.0, %v742
    %v744 = vpop.f32.mrb[0].mxu0
    %v745 = vadd.f32 0.0, %v744
    %746 = vmatprep.mubr.f32.mxu0 0.0
    %747 = vmatmul.mubr.f32.gmra.mrb[0].mxu0 %v77
    %v748 = vpop.f32.mrb[0].mxu0
    %v749 = vadd.f32 0.0, %v748
    %v750 = vpop.f32.mrb[0].mxu0
    %v751 = vadd.f32 0.0, %v750
    %752 = vdwg.mxu0
    %753 = vmatprep.subr.mxu0 %v85
    %754 = vmatpush1.msra.mxu0 %v84
    %755 = vmatprep.subr.mxu0 %v97
    %756 = vmatpush1.msra.mxu0 %v96
    %757 = vmatprep.subr.mxu0 %v109
    %758 = vmatpush1.msra.mxu0 %v108
    %759 = vmatprep.subr.mxu0 %v121
    %760 = vmatpush1.msra.mxu0 %v120
    %761 = vmatprep.subr.mxu0 %v133
    %762 = vmatpush1.msra.mxu0 %v132
    %763 = vmatprep.subr.mxu0 %v145
    %764 = vmatpush1.msra.mxu0 %v144
    %765 = vmatprep.subr.mxu0 %v157
    %766 = vmatpush1.msra.mxu0 %v156
    %767 = vmatprep.subr.mxu0 %v169
    %768 = vmatpush1.msra.mxu0 %v168
    %769 = vmatprep.subr.mxu0 %v181
    %770 = vmatpush1.msra.mxu0 %v180
    %771 = vmatprep.subr.mxu0 %v193
    %772 = vmatpush1.msra.mxu0 %v192
    %773 = vmatprep.subr.mxu0 %v205
    %774 = vmatpush1.msra.mxu0 %v204
    %775 = vmatprep.subr.mxu0 %v217
    %776 = vmatpush1.msra.mxu0 %v216
    %777 = vmatprep.subr.mxu0 %v229
    %778 = vmatpush1.msra.mxu0 %v228
    %779 = vmatprep.subr.mxu0 %v241
    %780 = vmatpush1.msra.mxu0 %v240
    %781 = vmatprep.subr.mxu0 %v253
    %782 = vmatpush1.msra.mxu0 %v252
    %783 = vmatprep.subr.mxu0 %v265
    %784 = vmatpush1.msra.mxu0 %v264
    %785 = vmatprep.subr.mxu0 0.0
    %786 = vmatpush1.msra.mxu0 0.0
    %787 = vmatprep.subr.mxu0 0.0
    %788 = vmatpush1.msra.mxu0 0.0
    %789 = vmatprep.subr.mxu0 0.0
    %790 = vmatpush1.msra.mxu0 0.0
    %791 = vmatprep.subr.mxu0 0.0
    %792 = vmatpush1.msra.mxu0 0.0
    %793 = vmatprep.subr.mxu0 0.0
    %794 = vmatpush1.msra.mxu0 0.0
    %795 = vmatprep.subr.mxu0 0.0
    %796 = vmatpush1.msra.mxu0 0.0
    %797 = vmatprep.subr.mxu0 0.0
    %798 = vmatpush1.msra.mxu0 0.0
    %799 = vmatprep.subr.mxu0 0.0
    %800 = vmatpush1.msra.mxu0 0.0
    %801 = vmatprep.subr.mxu0 0.0
    %802 = vmatpush1.msra.mxu0 0.0
    %803 = vmatprep.subr.mxu0 0.0
    %804 = vmatpush1.msra.mxu0 0.0
    %805 = vmatprep.subr.mxu0 0.0
    %806 = vmatpush1.msra.mxu0 0.0
    %807 = vmatprep.subr.mxu0 0.0
    %808 = vmatpush1.msra.mxu0 0.0
    %809 = vmatprep.subr.mxu0 0.0
    %810 = vmatpush1.msra.mxu0 0.0
    %811 = vmatprep.subr.mxu0 0.0
    %812 = vmatpush1.msra.mxu0 0.0
    %813 = vmatprep.subr.mxu0 0.0
    %814 = vmatpush1.msra.mxu0 0.0
    %815 = vmatprep.subr.mxu0 0.0
    %816 = vmatpush1.msra.mxu0 0.0
    %817 = vmatprep.mubr.f32.mxu0 0.0
    %818 = vmatmul.mubr.f32.gmra.mrb[0].mxu0 %v62
    %v819 = vpop.f32.mrb[0].mxu0
    %v820 = vadd.f32 0.0, %v819
    %v821 = vpop.f32.mrb[0].mxu0
    %v822 = vadd.f32 0.0, %v821
    %823 = vmatprep.mubr.f32.mxu0 0.0
    %824 = vmatmul.mubr.f32.gmra.mrb[0].mxu0 %v63
    %v825 = vpop.f32.mrb[0].mxu0
    %v826 = vadd.f32 0.0, %v825
    %v827 = vpop.f32.mrb[0].mxu0
    %v828 = vadd.f32 0.0, %v827
    %829 = vmatprep.mubr.f32.mxu0 0.0
    %830 = vmatmul.mubr.f32.gmra.mrb[0].mxu0 %v64
    %v831 = vpop.f32.mrb[0].mxu0
    %v832 = vadd.f32 0.0, %v831
    %v833 = vpop.f32.mrb[0].mxu0
    %v834 = vadd.f32 0.0, %v833
    %835 = vmatprep.mubr.f32.mxu0 0.0
    %836 = vmatmul.mubr.f32.gmra.mrb[0].mxu0 %v65
    %v837 = vpop.f32.mrb[0].mxu0
    %v838 = vadd.f32 0.0, %v837
    %v839 = vpop.f32.mrb[0].mxu0
    %v840 = vadd.f32 0.0, %v839
    %841 = vmatprep.mubr.f32.mxu0 0.0
    %842 = vmatmul.mubr.f32.gmra.mrb[0].mxu0 %v66
    %v843 = vpop.f32.mrb[0].mxu0
    %v844 = vadd.f32 0.0, %v843
    %v845 = vpop.f32.mrb[0].mxu0
    %v846 = vadd.f32 0.0, %v845
    %847 = vmatprep.mubr.f32.mxu0 0.0
    %848 = vmatmul.mubr.f32.gmra.mrb[0].mxu0 %v67
    %v849 = vpop.f32.mrb[0].mxu0
    %v850 = vadd.f32 0.0, %v849
    %v851 = vpop.f32.mrb[0].mxu0
    %v852 = vadd.f32 0.0, %v851
    %853 = vmatprep.mubr.f32.mxu0 0.0
    %854 = vmatmul.mubr.f32.gmra.mrb[0].mxu0 %v68
    %v855 = vpop.f32.mrb[0].mxu0
    %v856 = vadd.f32 0.0, %v855
    %v857 = vpop.f32.mrb[0].mxu0
    %v858 = vadd.f32 0.0, %v857
    %859 = vmatprep.mubr.f32.mxu0 0.0
    %860 = vmatmul.mubr.f32.gmra.mrb[0].mxu0 %v69
    %v861 = vpop.f32.mrb[0].mxu0
    %v862 = vadd.f32 0.0, %v861
    %v863 = vpop.f32.mrb[0].mxu0
    %v864 = vadd.f32 0.0, %v863
    %865 = vmatprep.mubr.f32.mxu0 0.0
    %866 = vmatmul.mubr.f32.gmra.mrb[0].mxu0 %v70
    %v867 = vpop.f32.mrb[0].mxu0
    %v868 = vadd.f32 0.0, %v867
    %v869 = vpop.f32.mrb[0].mxu0
    %v870 = vadd.f32 0.0, %v869
    %871 = vmatprep.mubr.f32.mxu0 0.0
    %872 = vmatmul.mubr.f32.gmra.mrb[0].mxu0 %v71
    %v873 = vpop.f32.mrb[0].mxu0
    %v874 = vadd.f32 0.0, %v873
    %v875 = vpop.f32.mrb[0].mxu0
    %v876 = vadd.f32 0.0, %v875
    %877 = vmatprep.mubr.f32.mxu0 0.0
    %878 = vmatmul.mubr.f32.gmra.mrb[0].mxu0 %v72
    %v879 = vpop.f32.mrb[0].mxu0
    %v880 = vadd.f32 0.0, %v879
    %v881 = vpop.f32.mrb[0].mxu0
    %v882 = vadd.f32 0.0, %v881
    %883 = vmatprep.mubr.f32.mxu0 0.0
    %884 = vmatmul.mubr.f32.gmra.mrb[0].mxu0 %v73
    %v885 = vpop.f32.mrb[0].mxu0
    %v886 = vadd.f32 0.0, %v885
    %v887 = vpop.f32.mrb[0].mxu0
    %v888 = vadd.f32 0.0, %v887
    %889 = vmatprep.mubr.f32.mxu0 0.0
    %890 = vmatmul.mubr.f32.gmra.mrb[0].mxu0 %v74
    %v891 = vpop.f32.mrb[0].mxu0
    %v892 = vadd.f32 0.0, %v891
    %v893 = vpop.f32.mrb[0].mxu0
    %v894 = vadd.f32 0.0, %v893
    %895 = vmatprep.mubr.f32.mxu0 0.0
    %896 = vmatmul.mubr.f32.gmra.mrb[0].mxu0 %v75
    %v897 = vpop.f32.mrb[0].mxu0
    %v898 = vadd.f32 0.0, %v897
    %v899 = vpop.f32.mrb[0].mxu0
    %v900 = vadd.f32 0.0, %v899
    %901 = vmatprep.mubr.f32.mxu0 0.0
    %902 = vmatmul.mubr.f32.gmra.mrb[0].mxu0 %v76
    %v903 = vpop.f32.mrb[0].mxu0
    %v904 = vadd.f32 0.0, %v903
    %v905 = vpop.f32.mrb[0].mxu0
    %v906 = vadd.f32 0.0, %v905
    %907 = vmatprep.mubr.f32.mxu0 0.0
    %908 = vmatmul.mubr.f32.gmra.mrb[0].mxu0 %v77
    %v909 = vpop.f32.mrb[0].mxu0
    %v910 = vadd.f32 0.0, %v909
    %v911 = vpop.f32.mrb[0].mxu0
    %v912 = vadd.f32 0.0, %v911
    %913 = vdwg.mxu0
    %914 = vmatprep.subr.mxu0 %v87
    %915 = vmatpush1.msra.mxu0 %v86
    %916 = vmatprep.subr.mxu0 %v99
    %917 = vmatpush1.msra.mxu0 %v98
    %918 = vmatprep.subr.mxu0 %v111
    %919 = vmatpush1.msra.mxu0 %v110
    %920 = vmatprep.subr.mxu0 %v123
    %921 = vmatpush1.msra.mxu0 %v122
    %922 = vmatprep.subr.mxu0 %v135
    %923 = vmatpush1.msra.mxu0 %v134
    %924 = vmatprep.subr.mxu0 %v147
    %925 = vmatpush1.msra.mxu0 %v146
    %926 = vmatprep.subr.mxu0 %v159
    %927 = vmatpush1.msra.mxu0 %v158
    %928 = vmatprep.subr.mxu0 %v171
    %929 = vmatpush1.msra.mxu0 %v170
    %930 = vmatprep.subr.mxu0 %v183
    %931 = vmatpush1.msra.mxu0 %v182
    %932 = vmatprep.subr.mxu0 %v195
    %933 = vmatpush1.msra.mxu0 %v194
    %934 = vmatprep.subr.mxu0 %v207
    %935 = vmatpush1.msra.mxu0 %v206
    %936 = vmatprep.subr.mxu0 %v219
    %937 = vmatpush1.msra.mxu0 %v218
    %938 = vmatprep.subr.mxu0 %v231
    %939 = vmatpush1.msra.mxu0 %v230
    %940 = vmatprep.subr.mxu0 %v243
    %941 = vmatpush1.msra.mxu0 %v242
    %942 = vmatprep.subr.mxu0 %v255
    %943 = vmatpush1.msra.mxu0 %v254
    %944 = vmatprep.subr.mxu0 %v267
    %945 = vmatpush1.msra.mxu0 %v266
    %946 = vmatprep.subr.mxu0 0.0
    %947 = vmatpush1.msra.mxu0 0.0
    %948 = vmatprep.subr.mxu0 0.0
    %949 = vmatpush1.msra.mxu0 0.0
    %950 = vmatprep.subr.mxu0 0.0
    %951 = vmatpush1.msra.mxu0 0.0
    %952 = vmatprep.subr.mxu0 0.0
    %953 = vmatpush1.msra.mxu0 0.0
    %954 = vmatprep.subr.mxu0 0.0
    %955 = vmatpush1.msra.mxu0 0.0
    %956 = vmatprep.subr.mxu0 0.0
    %957 = vmatpush1.msra.mxu0 0.0
    %958 = vmatprep.subr.mxu0 0.0
    %959 = vmatpush1.msra.mxu0 0.0
    %960 = vmatprep.subr.mxu0 0.0
    %961 = vmatpush1.msra.mxu0 0.0
    %962 = vmatprep.subr.mxu0 0.0
    %963 = vmatpush1.msra.mxu0 0.0
    %964 = vmatprep.subr.mxu0 0.0
    %965 = vmatpush1.msra.mxu0 0.0
    %966 = vmatprep.subr.mxu0 0.0
    %967 = vmatpush1.msra.mxu0 0.0
    %968 = vmatprep.subr.mxu0 0.0
    %969 = vmatpush1.msra.mxu0 0.0
    %970 = vmatprep.subr.mxu0 0.0
    %971 = vmatpush1.msra.mxu0 0.0
    %972 = vmatprep.subr.mxu0 0.0
    %973 = vmatpush1.msra.mxu0 0.0
    %974 = vmatprep.subr.mxu0 0.0
    %975 = vmatpush1.msra.mxu0 0.0
    %976 = vmatprep.subr.mxu0 0.0
    %977 = vmatpush1.msra.mxu0 0.0
    %978 = vmatprep.mubr.f32.mxu0 0.0
    %979 = vmatmul.mubr.f32.gmra.mrb[0].mxu0 %v62
    %v980 = vpop.f32.mrb[0].mxu0
    %v981 = vadd.f32 0.0, %v980
    %v982 = vpop.f32.mrb[0].mxu0
    %v983 = vadd.f32 0.0, %v982
    %984 = vmatprep.mubr.f32.mxu0 0.0
    %985 = vmatmul.mubr.f32.gmra.mrb[0].mxu0 %v63
    %v986 = vpop.f32.mrb[0].mxu0
    %v987 = vadd.f32 0.0, %v986
    %v988 = vpop.f32.mrb[0].mxu0
    %v989 = vadd.f32 0.0, %v988
    %990 = vmatprep.mubr.f32.mxu0 0.0
    %991 = vmatmul.mubr.f32.gmra.mrb[0].mxu0 %v64
    %v992 = vpop.f32.mrb[0].mxu0
    %v993 = vadd.f32 0.0, %v992
    %v994 = vpop.f32.mrb[0].mxu0
    %v995 = vadd.f32 0.0, %v994
    %996 = vmatprep.mubr.f32.mxu0 0.0
    %997 = vmatmul.mubr.f32.gmra.mrb[0].mxu0 %v65
    %v998 = vpop.f32.mrb[0].mxu0
    %v999 = vadd.f32 0.0, %v998
    %v1000 = vpop.f32.mrb[0].mxu0
    %v1001 = vadd.f32 0.0, %v1000
    %1002 = vmatprep.mubr.f32.mxu0 0.0
    %1003 = vmatmul.mubr.f32.gmra.mrb[0].mxu0 %v66
    %v1004 = vpop.f32.mrb[0].mxu0
    %v1005 = vadd.f32 0.0, %v1004
    %v1006 = vpop.f32.mrb[0].mxu0
    %v1007 = vadd.f32 0.0, %v1006
    %1008 = vmatprep.mubr.f32.mxu0 0.0
    %1009 = vmatmul.mubr.f32.gmra.mrb[0].mxu0 %v67
    %v1010 = vpop.f32.mrb[0].mxu0
    %v1011 = vadd.f32 0.0, %v1010
    %v1012 = vpop.f32.mrb[0].mxu0
    %v1013 = vadd.f32 0.0, %v1012
    %1014 = vmatprep.mubr.f32.mxu0 0.0
    %1015 = vmatmul.mubr.f32.gmra.mrb[0].mxu0 %v68
    %v1016 = vpop.f32.mrb[0].mxu0
    %v1017 = vadd.f32 0.0, %v1016
    %v1018 = vpop.f32.mrb[0].mxu0
    %v1019 = vadd.f32 0.0, %v1018
    %1020 = vmatprep.mubr.f32.mxu0 0.0
    %1021 = vmatmul.mubr.f32.gmra.mrb[0].mxu0 %v69
    %v1022 = vpop.f32.mrb[0].mxu0
    %v1023 = vadd.f32 0.0, %v1022
    %v1024 = vpop.f32.mrb[0].mxu0
    %v1025 = vadd.f32 0.0, %v1024
    %1026 = vmatprep.mubr.f32.mxu0 0.0
    %1027 = vmatmul.mubr.f32.gmra.mrb[0].mxu0 %v70
    %v1028 = vpop.f32.mrb[0].mxu0
    %v1029 = vadd.f32 0.0, %v1028
    %v1030 = vpop.f32.mrb[0].mxu0
    %v1031 = vadd.f32 0.0, %v1030
    %1032 = vmatprep.mubr.f32.mxu0 0.0
    %1033 = vmatmul.mubr.f32.gmra.mrb[0].mxu0 %v71
    %v1034 = vpop.f32.mrb[0].mxu0
    %v1035 = vadd.f32 0.0, %v1034
    %v1036 = vpop.f32.mrb[0].mxu0
    %v1037 = vadd.f32 0.0, %v1036
    %1038 = vmatprep.mubr.f32.mxu0 0.0
    %1039 = vmatmul.mubr.f32.gmra.mrb[0].mxu0 %v72
    %v1040 = vpop.f32.mrb[0].mxu0
    %v1041 = vadd.f32 0.0, %v1040
    %v1042 = vpop.f32.mrb[0].mxu0
    %v1043 = vadd.f32 0.0, %v1042
    %1044 = vmatprep.mubr.f32.mxu0 0.0
    %1045 = vmatmul.mubr.f32.gmra.mrb[0].mxu0 %v73
    %v1046 = vpop.f32.mrb[0].mxu0
    %v1047 = vadd.f32 0.0, %v1046
    %v1048 = vpop.f32.mrb[0].mxu0
    %v1049 = vadd.f32 0.0, %v1048
    %1050 = vmatprep.mubr.f32.mxu0 0.0
    %1051 = vmatmul.mubr.f32.gmra.mrb[0].mxu0 %v74
    %v1052 = vpop.f32.mrb[0].mxu0
    %v1053 = vadd.f32 0.0, %v1052
    %v1054 = vpop.f32.mrb[0].mxu0
    %v1055 = vadd.f32 0.0, %v1054
    %1056 = vmatprep.mubr.f32.mxu0 0.0
    %1057 = vmatmul.mubr.f32.gmra.mrb[0].mxu0 %v75
    %v1058 = vpop.f32.mrb[0].mxu0
    %v1059 = vadd.f32 0.0, %v1058
    %v1060 = vpop.f32.mrb[0].mxu0
    %v1061 = vadd.f32 0.0, %v1060
    %1062 = vmatprep.mubr.f32.mxu0 0.0
    %1063 = vmatmul.mubr.f32.gmra.mrb[0].mxu0 %v76
    %v1064 = vpop.f32.mrb[0].mxu0
    %v1065 = vadd.f32 0.0, %v1064
    %v1066 = vpop.f32.mrb[0].mxu0
    %v1067 = vadd.f32 0.0, %v1066
    %1068 = vmatprep.mubr.f32.mxu0 0.0
    %1069 = vmatmul.mubr.f32.gmra.mrb[0].mxu0 %v77
    %v1070 = vpop.f32.mrb[0].mxu0
    %v1071 = vadd.f32 0.0, %v1070
    %v1072 = vpop.f32.mrb[0].mxu0
    %v1073 = vadd.f32 0.0, %v1072
    %1074 = vdwg.mxu0
    %1075 = vmatprep.subr.mxu0 %v89
    %1076 = vmatpush1.msra.mxu0 %v88
    %1077 = vmatprep.subr.mxu0 %v101
    %1078 = vmatpush1.msra.mxu0 %v100
    %1079 = vmatprep.subr.mxu0 %v113
    %1080 = vmatpush1.msra.mxu0 %v112
    %1081 = vmatprep.subr.mxu0 %v125
    %1082 = vmatpush1.msra.mxu0 %v124
    %1083 = vmatprep.subr.mxu0 %v137
    %1084 = vmatpush1.msra.mxu0 %v136
    %1085 = vmatprep.subr.mxu0 %v149
    %1086 = vmatpush1.msra.mxu0 %v148
    %1087 = vmatprep.subr.mxu0 %v161
    %1088 = vmatpush1.msra.mxu0 %v160
    %1089 = vmatprep.subr.mxu0 %v173
    %1090 = vmatpush1.msra.mxu0 %v172
    %1091 = vmatprep.subr.mxu0 %v185
    %1092 = vmatpush1.msra.mxu0 %v184
    %1093 = vmatprep.subr.mxu0 %v197
    %1094 = vmatpush1.msra.mxu0 %v196
    %1095 = vmatprep.subr.mxu0 %v209
    %1096 = vmatpush1.msra.mxu0 %v208
    %1097 = vmatprep.subr.mxu0 %v221
    %1098 = vmatpush1.msra.mxu0 %v220
    %1099 = vmatprep.subr.mxu0 %v233
    %1100 = vmatpush1.msra.mxu0 %v232
    %1101 = vmatprep.subr.mxu0 %v245
    %1102 = vmatpush1.msra.mxu0 %v244
    %1103 = vmatprep.subr.mxu0 %v257
    %1104 = vmatpush1.msra.mxu0 %v256
    %1105 = vmatprep.subr.mxu0 %v269
    %1106 = vmatpush1.msra.mxu0 %v268
    %1107 = vmatprep.subr.mxu0 0.0
    %1108 = vmatpush1.msra.mxu0 0.0
    %1109 = vmatprep.subr.mxu0 0.0
    %1110 = vmatpush1.msra.mxu0 0.0
    %1111 = vmatprep.subr.mxu0 0.0
    %1112 = vmatpush1.msra.mxu0 0.0
    %1113 = vmatprep.subr.mxu0 0.0
    %1114 = vmatpush1.msra.mxu0 0.0
    %1115 = vmatprep.subr.mxu0 0.0
    %1116 = vmatpush1.msra.mxu0 0.0
    %1117 = vmatprep.subr.mxu0 0.0
    %1118 = vmatpush1.msra.mxu0 0.0
    %1119 = vmatprep.subr.mxu0 0.0
    %1120 = vmatpush1.msra.mxu0 0.0
    %1121 = vmatprep.subr.mxu0 0.0
    %1122 = vmatpush1.msra.mxu0 0.0
    %1123 = vmatprep.subr.mxu0 0.0
    %1124 = vmatpush1.msra.mxu0 0.0
    %1125 = vmatprep.subr.mxu0 0.0
    %1126 = vmatpush1.msra.mxu0 0.0
    %1127 = vmatprep.subr.mxu0 0.0
    %1128 = vmatpush1.msra.mxu0 0.0
    %1129 = vmatprep.subr.mxu0 0.0
    %1130 = vmatpush1.msra.mxu0 0.0
    %1131 = vmatprep.subr.mxu0 0.0
    %1132 = vmatpush1.msra.mxu0 0.0
    %1133 = vmatprep.subr.mxu0 0.0
    %1134 = vmatpush1.msra.mxu0 0.0
    %1135 = vmatprep.subr.mxu0 0.0
    %1136 = vmatpush1.msra.mxu0 0.0
    %1137 = vmatprep.subr.mxu0 0.0
    %1138 = vmatpush1.msra.mxu0 0.0
    %1139 = vmatprep.mubr.f32.mxu0 0.0
    %1140 = vmatmul.mubr.f32.gmra.mrb[0].mxu0 %v62
    %v1141 = vpop.f32.mrb[0].mxu0
    %v1142 = vadd.f32 0.0, %v1141
    %v1143 = vpop.f32.mrb[0].mxu0
    %v1144 = vadd.f32 0.0, %v1143
    %1145 = vmatprep.mubr.f32.mxu0 0.0
    %1146 = vmatmul.mubr.f32.gmra.mrb[0].mxu0 %v63
    %v1147 = vpop.f32.mrb[0].mxu0
    %v1148 = vadd.f32 0.0, %v1147
    %v1149 = vpop.f32.mrb[0].mxu0
    %v1150 = vadd.f32 0.0, %v1149
    %1151 = vmatprep.mubr.f32.mxu0 0.0
    %1152 = vmatmul.mubr.f32.gmra.mrb[0].mxu0 %v64
    %v1153 = vpop.f32.mrb[0].mxu0
    %v1154 = vadd.f32 0.0, %v1153
    %v1155 = vpop.f32.mrb[0].mxu0
    %v1156 = vadd.f32 0.0, %v1155
    %1157 = vmatprep.mubr.f32.mxu0 0.0
    %1158 = vmatmul.mubr.f32.gmra.mrb[0].mxu0 %v65
    %v1159 = vpop.f32.mrb[0].mxu0
    %v1160 = vadd.f32 0.0, %v1159
    %v1161 = vpop.f32.mrb[0].mxu0
    %v1162 = vadd.f32 0.0, %v1161
    %1163 = vmatprep.mubr.f32.mxu0 0.0
    %1164 = vmatmul.mubr.f32.gmra.mrb[0].mxu0 %v66
    %v1165 = vpop.f32.mrb[0].mxu0
    %v1166 = vadd.f32 0.0, %v1165
    %v1167 = vpop.f32.mrb[0].mxu0
    %v1168 = vadd.f32 0.0, %v1167
    %1169 = vmatprep.mubr.f32.mxu0 0.0
    %1170 = vmatmul.mubr.f32.gmra.mrb[0].mxu0 %v67
    %v1171 = vpop.f32.mrb[0].mxu0
    %v1172 = vadd.f32 0.0, %v1171
    %v1173 = vpop.f32.mrb[0].mxu0
    %v1174 = vadd.f32 0.0, %v1173
    %1175 = vmatprep.mubr.f32.mxu0 0.0
    %1176 = vmatmul.mubr.f32.gmra.mrb[0].mxu0 %v68
    %v1177 = vpop.f32.mrb[0].mxu0
    %v1178 = vadd.f32 0.0, %v1177
    %v1179 = vpop.f32.mrb[0].mxu0
    %v1180 = vadd.f32 0.0, %v1179
    %1181 = vmatprep.mubr.f32.mxu0 0.0
    %1182 = vmatmul.mubr.f32.gmra.mrb[0].mxu0 %v69
    %v1183 = vpop.f32.mrb[0].mxu0
    %v1184 = vadd.f32 0.0, %v1183
    %v1185 = vpop.f32.mrb[0].mxu0
    %v1186 = vadd.f32 0.0, %v1185
    %1187 = vmatprep.mubr.f32.mxu0 0.0
    %1188 = vmatmul.mubr.f32.gmra.mrb[0].mxu0 %v70
    %v1189 = vpop.f32.mrb[0].mxu0
    %v1190 = vadd.f32 0.0, %v1189
    %v1191 = vpop.f32.mrb[0].mxu0
    %v1192 = vadd.f32 0.0, %v1191
    %1193 = vmatprep.mubr.f32.mxu0 0.0
    %1194 = vmatmul.mubr.f32.gmra.mrb[0].mxu0 %v71
    %v1195 = vpop.f32.mrb[0].mxu0
    %v1196 = vadd.f32 0.0, %v1195
    %v1197 = vpop.f32.mrb[0].mxu0
    %v1198 = vadd.f32 0.0, %v1197
    %1199 = vmatprep.mubr.f32.mxu0 0.0
    %1200 = vmatmul.mubr.f32.gmra.mrb[0].mxu0 %v72
    %v1201 = vpop.f32.mrb[0].mxu0
    %v1202 = vadd.f32 0.0, %v1201
    %v1203 = vpop.f32.mrb[0].mxu0
    %v1204 = vadd.f32 0.0, %v1203
    %1205 = vmatprep.mubr.f32.mxu0 0.0
    %1206 = vmatmul.mubr.f32.gmra.mrb[0].mxu0 %v73
    %v1207 = vpop.f32.mrb[0].mxu0
    %v1208 = vadd.f32 0.0, %v1207
    %v1209 = vpop.f32.mrb[0].mxu0
    %v1210 = vadd.f32 0.0, %v1209
    %1211 = vmatprep.mubr.f32.mxu0 0.0
    %1212 = vmatmul.mubr.f32.gmra.mrb[0].mxu0 %v74
    %v1213 = vpop.f32.mrb[0].mxu0
    %v1214 = vadd.f32 0.0, %v1213
    %v1215 = vpop.f32.mrb[0].mxu0
    %v1216 = vadd.f32 0.0, %v1215
    %1217 = vmatprep.mubr.f32.mxu0 0.0
    %1218 = vmatmul.mubr.f32.gmra.mrb[0].mxu0 %v75
    %v1219 = vpop.f32.mrb[0].mxu0
    %v1220 = vadd.f32 0.0, %v1219
    %v1221 = vpop.f32.mrb[0].mxu0
    %v1222 = vadd.f32 0.0, %v1221
    %1223 = vmatprep.mubr.f32.mxu0 0.0
    %1224 = vmatmul.mubr.f32.gmra.mrb[0].mxu0 %v76
    %v1225 = vpop.f32.mrb[0].mxu0
    %v1226 = vadd.f32 0.0, %v1225
    %v1227 = vpop.f32.mrb[0].mxu0
    %v1228 = vadd.f32 0.0, %v1227
    %1229 = vmatprep.mubr.f32.mxu0 0.0
    %1230 = vmatmul.mubr.f32.gmra.mrb[0].mxu0 %v77
    %v1231 = vpop.f32.mrb[0].mxu0
    %v1232 = vadd.f32 0.0, %v1231
    %v1233 = vpop.f32.mrb[0].mxu0
    %v1234 = vadd.f32 0.0, %v1233
    %1235 = vdwg.mxu0
    %v1236 = vlaneseq
    %v1237 = vshrl.u32 %v1236, 7
    %v1238 = vadd.s32 %v1237, 8
    %v1239 = vrot.slane %v339, 1
    %v1240 = vrot.slane %v345, 1
    %v1241 = vrot.slane %v351, 1
    %v1242 = vrot.slane %v357, 1
    %v1243 = vrot.slane %v363, 1
    %v1244 = vrot.slane %v369, 1
    %v1245 = vrot.slane %v375, 1
    %v1246 = vrot.slane %v381, 1
    %v1247 = vrot.slane %v387, 1
    %v1248 = vrot.slane %v393, 1
    %v1249 = vrot.slane %v399, 1
    %v1250 = vrot.slane %v405, 1
    %v1251 = vrot.slane %v411, 1
    %v1252 = vrot.slane %v417, 1
    %v1253 = vrot.slane %v423, 1
    %v1254 = vrot.slane %v429, 1
    %vm1255 = vcmp.lt.s32.totalorder %v1237, 7
    %v1256 = vsel %vm1255, %v1253, %v1254
    %v1257 = vsel %vm1255, %v1252, %v1253
    %v1258 = vsel %vm1255, %v1251, %v1252
    %v1259 = vsel %vm1255, %v1250, %v1251
    %v1260 = vsel %vm1255, %v1249, %v1250
    %v1261 = vsel %vm1255, %v1248, %v1249
    %v1262 = vsel %vm1255, %v1247, %v1248
    %v1263 = vsel %vm1255, %v1246, %v1247
    %v1264 = vsel %vm1255, %v1245, %v1246
    %v1265 = vsel %vm1255, %v1244, %v1245
    %v1266 = vsel %vm1255, %v1243, %v1244
    %v1267 = vsel %vm1255, %v1242, %v1243
    %v1268 = vsel %vm1255, %v1241, %v1242
    %v1269 = vsel %vm1255, %v1240, %v1241
    %v1270 = vsel %vm1255, %v1239, %v1240
    %v1271 = vsel %vm1255, %v1254, %v1239
    %v1272 = vadd.f32 %v337, %v1270
    %v1273 = vadd.f32 %v343, %v1269
    %v1274 = vadd.f32 %v349, %v1268
    %v1275 = vadd.f32 %v355, %v1267
    %v1276 = vadd.f32 %v361, %v1266
    %v1277 = vadd.f32 %v367, %v1265
    %v1278 = vadd.f32 %v373, %v1264
    %v1279 = vadd.f32 %v379, %v1263
    %v1280 = vadd.f32 %v385, %v1262
    %v1281 = vadd.f32 %v391, %v1261
    %v1282 = vadd.f32 %v397, %v1260
    %v1283 = vadd.f32 %v403, %v1259
    %v1284 = vadd.f32 %v409, %v1258
    %v1285 = vadd.f32 %v415, %v1257
    %v1286 = vadd.f32 %v421, %v1256
    %v1287 = vadd.f32 %v427, %v1271
    %v1288 = vrot.slane %v498, 2
    %v1289 = vrot.slane %v504, 2
    %v1290 = vrot.slane %v510, 2
    %v1291 = vrot.slane %v516, 2
    %v1292 = vrot.slane %v522, 2
    %v1293 = vrot.slane %v528, 2
    %v1294 = vrot.slane %v534, 2
    %v1295 = vrot.slane %v540, 2
    %v1296 = vrot.slane %v546, 2
    %v1297 = vrot.slane %v552, 2
    %v1298 = vrot.slane %v558, 2
    %v1299 = vrot.slane %v564, 2
    %v1300 = vrot.slane %v570, 2
    %v1301 = vrot.slane %v576, 2
    %v1302 = vrot.slane %v582, 2
    %v1303 = vrot.slane %v588, 2
    %vm1304 = vcmp.lt.s32.totalorder %v1237, 6
    %v1305 = vsel %vm1304, %v1302, %v1303
    %v1306 = vsel %vm1304, %v1301, %v1302
    %v1307 = vsel %vm1304, %v1300, %v1301
    %v1308 = vsel %vm1304, %v1299, %v1300
    %v1309 = vsel %vm1304, %v1298, %v1299
    %v1310 = vsel %vm1304, %v1297, %v1298
    %v1311 = vsel %vm1304, %v1296, %v1297
    %v1312 = vsel %vm1304, %v1295, %v1296
    %v1313 = vsel %vm1304, %v1294, %v1295
    %v1314 = vsel %vm1304, %v1293, %v1294
    %v1315 = vsel %vm1304, %v1292, %v1293
    %v1316 = vsel %vm1304, %v1291, %v1292
    %v1317 = vsel %vm1304, %v1290, %v1291
    %v1318 = vsel %vm1304, %v1289, %v1290
    %v1319 = vsel %vm1304, %v1288, %v1289
    %v1320 = vsel %vm1304, %v1303, %v1288
    %v1321 = vadd.f32 %v1272, %v1319
    %v1322 = vadd.f32 %v1273, %v1318
    %v1323 = vadd.f32 %v1274, %v1317
    %v1324 = vadd.f32 %v1275, %v1316
    %v1325 = vadd.f32 %v1276, %v1315
    %v1326 = vadd.f32 %v1277, %v1314
    %v1327 = vadd.f32 %v1278, %v1313
    %v1328 = vadd.f32 %v1279, %v1312
    %v1329 = vadd.f32 %v1280, %v1311
    %v1330 = vadd.f32 %v1281, %v1310
    %v1331 = vadd.f32 %v1282, %v1309
    %v1332 = vadd.f32 %v1283, %v1308
    %v1333 = vadd.f32 %v1284, %v1307
    %v1334 = vadd.f32 %v1285, %v1306
    %v1335 = vadd.f32 %v1286, %v1305
    %v1336 = vadd.f32 %v1287, %v1320
    %vm1337 = vcmp.lt.s32.totalorder %v1237, 14
    %vm1338 = vcmp.lt.s32.totalorder %v1238, 14
    %v1339 = vsel %vm1337, %v1321, -3.4028235e+38
    %v1340 = vsel %vm1338, %v1322, -3.4028235e+38
    %v1341 = vsel %vm1337, %v1323, -3.4028235e+38
    %v1342 = vsel %vm1338, %v1324, -3.4028235e+38
    %v1343 = vsel %vm1337, %v1325, -3.4028235e+38
    %v1344 = vsel %vm1338, %v1326, -3.4028235e+38
    %v1345 = vsel %vm1337, %v1327, -3.4028235e+38
    %v1346 = vsel %vm1338, %v1328, -3.4028235e+38
    %v1347 = vsel %vm1337, %v1329, -3.4028235e+38
    %v1348 = vsel %vm1338, %v1330, -3.4028235e+38
    %v1349 = vsel %vm1337, %v1331, -3.4028235e+38
    %v1350 = vsel %vm1338, %v1332, -3.4028235e+38
    %v1351 = vsel %vm1337, %v1333, -3.4028235e+38
    %v1352 = vsel %vm1338, %v1334, -3.4028235e+38
    %v1353 = vsel %vm1337, %v1335, -3.4028235e+38
    %v1354 = vsel %vm1338, %v1336, -3.4028235e+38
    %v1355 = vmax.f32 %v1339, %v1340
    %v1356 = vrot.slane %v1355, 4
    %v1357 = vmax.f32 %v1355, %v1356
    %v1358 = vrot.slane %v1357, 2
    %v1359 = vmax.f32 %v1357, %v1358
    %v1360 = vrot.slane %v1359, 1
    %v1361 = vmax.f32 %v1359, %v1360
    %v1362 = vmax.f32 %v1341, %v1342
    %v1363 = vrot.slane %v1362, 4
    %v1364 = vmax.f32 %v1362, %v1363
    %v1365 = vrot.slane %v1364, 2
    %v1366 = vmax.f32 %v1364, %v1365
    %v1367 = vrot.slane %v1366, 1
    %v1368 = vmax.f32 %v1366, %v1367
    %v1369 = vmax.f32 %v1343, %v1344
    %v1370 = vrot.slane %v1369, 4
    %v1371 = vmax.f32 %v1369, %v1370
    %v1372 = vrot.slane %v1371, 2
    %v1373 = vmax.f32 %v1371, %v1372
    %v1374 = vrot.slane %v1373, 1
    %v1375 = vmax.f32 %v1373, %v1374
    %v1376 = vmax.f32 %v1345, %v1346
    %v1377 = vrot.slane %v1376, 4
    %v1378 = vmax.f32 %v1376, %v1377
    %v1379 = vrot.slane %v1378, 2
    %v1380 = vmax.f32 %v1378, %v1379
    %v1381 = vrot.slane %v1380, 1
    %v1382 = vmax.f32 %v1380, %v1381
    %v1383 = vmax.f32 %v1347, %v1348
    %v1384 = vrot.slane %v1383, 4
    %v1385 = vmax.f32 %v1383, %v1384
    %v1386 = vrot.slane %v1385, 2
    %v1387 = vmax.f32 %v1385, %v1386
    %v1388 = vrot.slane %v1387, 1
    %v1389 = vmax.f32 %v1387, %v1388
    %v1390 = vmax.f32 %v1349, %v1350
    %v1391 = vrot.slane %v1390, 4
    %v1392 = vmax.f32 %v1390, %v1391
    %v1393 = vrot.slane %v1392, 2
    %v1394 = vmax.f32 %v1392, %v1393
    %v1395 = vrot.slane %v1394, 1
    %v1396 = vmax.f32 %v1394, %v1395
    %v1397 = vmax.f32 %v1351, %v1352
    %v1398 = vrot.slane %v1397, 4
    %v1399 = vmax.f32 %v1397, %v1398
    %v1400 = vrot.slane %v1399, 2
    %v1401 = vmax.f32 %v1399, %v1400
    %v1402 = vrot.slane %v1401, 1
    %v1403 = vmax.f32 %v1401, %v1402
    %v1404 = vmax.f32 %v1353, %v1354
    %v1405 = vrot.slane %v1404, 4
    %v1406 = vmax.f32 %v1404, %v1405
    %v1407 = vrot.slane %v1406, 2
    %v1408 = vmax.f32 %v1406, %v1407
    %v1409 = vrot.slane %v1408, 1
    %v1410 = vmax.f32 %v1408, %v1409
    %v1411 = vrot.slane %v659, 1
    %v1412 = vrot.slane %v665, 1
    %v1413 = vrot.slane %v671, 1
    %v1414 = vrot.slane %v677, 1
    %v1415 = vrot.slane %v683, 1
    %v1416 = vrot.slane %v689, 1
    %v1417 = vrot.slane %v695, 1
    %v1418 = vrot.slane %v701, 1
    %v1419 = vrot.slane %v707, 1
    %v1420 = vrot.slane %v713, 1
    %v1421 = vrot.slane %v719, 1
    %v1422 = vrot.slane %v725, 1
    %v1423 = vrot.slane %v731, 1
    %v1424 = vrot.slane %v737, 1
    %v1425 = vrot.slane %v743, 1
    %v1426 = vrot.slane %v749, 1
    %v1427 = vsel %vm1255, %v1425, %v1426
    %v1428 = vsel %vm1255, %v1424, %v1425
    %v1429 = vsel %vm1255, %v1423, %v1424
    %v1430 = vsel %vm1255, %v1422, %v1423
    %v1431 = vsel %vm1255, %v1421, %v1422
    %v1432 = vsel %vm1255, %v1420, %v1421
    %v1433 = vsel %vm1255, %v1419, %v1420
    %v1434 = vsel %vm1255, %v1418, %v1419
    %v1435 = vsel %vm1255, %v1417, %v1418
    %v1436 = vsel %vm1255, %v1416, %v1417
    %v1437 = vsel %vm1255, %v1415, %v1416
    %v1438 = vsel %vm1255, %v1414, %v1415
    %v1439 = vsel %vm1255, %v1413, %v1414
    %v1440 = vsel %vm1255, %v1412, %v1413
    %v1441 = vsel %vm1255, %v1411, %v1412
    %v1442 = vsel %vm1255, %v1426, %v1411
    %v1443 = vadd.f32 %v500, %v1441
    %v1444 = vadd.f32 %v506, %v1440
    %v1445 = vadd.f32 %v512, %v1439
    %v1446 = vadd.f32 %v518, %v1438
    %v1447 = vadd.f32 %v524, %v1437
    %v1448 = vadd.f32 %v530, %v1436
    %v1449 = vadd.f32 %v536, %v1435
    %v1450 = vadd.f32 %v542, %v1434
    %v1451 = vadd.f32 %v548, %v1433
    %v1452 = vadd.f32 %v554, %v1432
    %v1453 = vadd.f32 %v560, %v1431
    %v1454 = vadd.f32 %v566, %v1430
    %v1455 = vadd.f32 %v572, %v1429
    %v1456 = vadd.f32 %v578, %v1428
    %v1457 = vadd.f32 %v584, %v1427
    %v1458 = vadd.f32 %v590, %v1442
    %v1459 = vrot.slane %v661, 2
    %v1460 = vrot.slane %v667, 2
    %v1461 = vrot.slane %v673, 2
    %v1462 = vrot.slane %v679, 2
    %v1463 = vrot.slane %v685, 2
    %v1464 = vrot.slane %v691, 2
    %v1465 = vrot.slane %v697, 2
    %v1466 = vrot.slane %v703, 2
    %v1467 = vrot.slane %v709, 2
    %v1468 = vrot.slane %v715, 2
    %v1469 = vrot.slane %v721, 2
    %v1470 = vrot.slane %v727, 2
    %v1471 = vrot.slane %v733, 2
    %v1472 = vrot.slane %v739, 2
    %v1473 = vrot.slane %v745, 2
    %v1474 = vrot.slane %v751, 2
    %v1475 = vsel %vm1304, %v1473, %v1474
    %v1476 = vsel %vm1304, %v1472, %v1473
    %v1477 = vsel %vm1304, %v1471, %v1472
    %v1478 = vsel %vm1304, %v1470, %v1471
    %v1479 = vsel %vm1304, %v1469, %v1470
    %v1480 = vsel %vm1304, %v1468, %v1469
    %v1481 = vsel %vm1304, %v1467, %v1468
    %v1482 = vsel %vm1304, %v1466, %v1467
    %v1483 = vsel %vm1304, %v1465, %v1466
    %v1484 = vsel %vm1304, %v1464, %v1465
    %v1485 = vsel %vm1304, %v1463, %v1464
    %v1486 = vsel %vm1304, %v1462, %v1463
    %v1487 = vsel %vm1304, %v1461, %v1462
    %v1488 = vsel %vm1304, %v1460, %v1461
    %v1489 = vsel %vm1304, %v1459, %v1460
    %v1490 = vsel %vm1304, %v1474, %v1459
    %v1491 = vadd.f32 %v1443, %v1489
    %v1492 = vadd.f32 %v1444, %v1488
    %v1493 = vadd.f32 %v1445, %v1487
    %v1494 = vadd.f32 %v1446, %v1486
    %v1495 = vadd.f32 %v1447, %v1485
    %v1496 = vadd.f32 %v1448, %v1484
    %v1497 = vadd.f32 %v1449, %v1483
    %v1498 = vadd.f32 %v1450, %v1482
    %v1499 = vadd.f32 %v1451, %v1481
    %v1500 = vadd.f32 %v1452, %v1480
    %v1501 = vadd.f32 %v1453, %v1479
    %v1502 = vadd.f32 %v1454, %v1478
    %v1503 = vadd.f32 %v1455, %v1477
    %v1504 = vadd.f32 %v1456, %v1476
    %v1505 = vadd.f32 %v1457, %v1475
    %v1506 = vadd.f32 %v1458, %v1490
    %v1507 = vrot.slane %v820, 3
    %v1508 = vrot.slane %v826, 3
    %v1509 = vrot.slane %v832, 3
    %v1510 = vrot.slane %v838, 3
    %v1511 = vrot.slane %v844, 3
    %v1512 = vrot.slane %v850, 3
    %v1513 = vrot.slane %v856, 3
    %v1514 = vrot.slane %v862, 3
    %v1515 = vrot.slane %v868, 3
    %v1516 = vrot.slane %v874, 3
    %v1517 = vrot.slane %v880, 3
    %v1518 = vrot.slane %v886, 3
    %v1519 = vrot.slane %v892, 3
    %v1520 = vrot.slane %v898, 3
    %v1521 = vrot.slane %v904, 3
    %v1522 = vrot.slane %v910, 3
    %vm1523 = vcmp.lt.s32.totalorder %v1237, 5
    %v1524 = vsel %vm1523, %v1521, %v1522
    %v1525 = vsel %vm1523, %v1520, %v1521
    %v1526 = vsel %vm1523, %v1519, %v1520
    %v1527 = vsel %vm1523, %v1518, %v1519
    %v1528 = vsel %vm1523, %v1517, %v1518
    %v1529 = vsel %vm1523, %v1516, %v1517
    %v1530 = vsel %vm1523, %v1515, %v1516
    %v1531 = vsel %vm1523, %v1514, %v1515
    %v1532 = vsel %vm1523, %v1513, %v1514
    %v1533 = vsel %vm1523, %v1512, %v1513
    %v1534 = vsel %vm1523, %v1511, %v1512
    %v1535 = vsel %vm1523, %v1510, %v1511
    %v1536 = vsel %vm1523, %v1509, %v1510
    %v1537 = vsel %vm1523, %v1508, %v1509
    %v1538 = vsel %vm1523, %v1507, %v1508
    %v1539 = vsel %vm1523, %v1522, %v1507
    %v1540 = vadd.f32 %v1491, %v1538
    %v1541 = vadd.f32 %v1492, %v1537
    %v1542 = vadd.f32 %v1493, %v1536
    %v1543 = vadd.f32 %v1494, %v1535
    %v1544 = vadd.f32 %v1495, %v1534
    %v1545 = vadd.f32 %v1496, %v1533
    %v1546 = vadd.f32 %v1497, %v1532
    %v1547 = vadd.f32 %v1498, %v1531
    %v1548 = vadd.f32 %v1499, %v1530
    %v1549 = vadd.f32 %v1500, %v1529
    %v1550 = vadd.f32 %v1501, %v1528
    %v1551 = vadd.f32 %v1502, %v1527
    %v1552 = vadd.f32 %v1503, %v1526
    %v1553 = vadd.f32 %v1504, %v1525
    %v1554 = vadd.f32 %v1505, %v1524
    %v1555 = vadd.f32 %v1506, %v1539
    %vm1556 = vcmp.lt.s32.totalorder %v1237, 13
    %vm1557 = vcmp.lt.s32.totalorder %v1238, 13
    %v1558 = vsel %vm1556, %v1540, -3.4028235e+38
    %v1559 = vsel %vm1557, %v1541, -3.4028235e+38
    %v1560 = vsel %vm1556, %v1542, -3.4028235e+38
    %v1561 = vsel %vm1557, %v1543, -3.4028235e+38
    %v1562 = vsel %vm1556, %v1544, -3.4028235e+38
    %v1563 = vsel %vm1557, %v1545, -3.4028235e+38
    %v1564 = vsel %vm1556, %v1546, -3.4028235e+38
    %v1565 = vsel %vm1557, %v1547, -3.4028235e+38
    %v1566 = vsel %vm1556, %v1548, -3.4028235e+38
    %v1567 = vsel %vm1557, %v1549, -3.4028235e+38
    %v1568 = vsel %vm1556, %v1550, -3.4028235e+38
    %v1569 = vsel %vm1557, %v1551, -3.4028235e+38
    %v1570 = vsel %vm1556, %v1552, -3.4028235e+38
    %v1571 = vsel %vm1557, %v1553, -3.4028235e+38
    %v1572 = vsel %vm1556, %v1554, -3.4028235e+38
    %v1573 = vsel %vm1557, %v1555, -3.4028235e+38
    %v1574 = vmax.f32 %v1558, %v1559
    %v1575 = vrot.slane %v1574, 4
    %v1576 = vmax.f32 %v1574, %v1575
    %v1577 = vrot.slane %v1576, 2
    %v1578 = vmax.f32 %v1576, %v1577
    %v1579 = vrot.slane %v1578, 1
    %v1580 = vmax.f32 %v1578, %v1579
    %v1581 = vmax.f32 %v1560, %v1561
    %v1582 = vrot.slane %v1581, 4
    %v1583 = vmax.f32 %v1581, %v1582
    %v1584 = vrot.slane %v1583, 2
    %v1585 = vmax.f32 %v1583, %v1584
    %v1586 = vrot.slane %v1585, 1
    %v1587 = vmax.f32 %v1585, %v1586
    %v1588 = vmax.f32 %v1562, %v1563
    %v1589 = vrot.slane %v1588, 4
    %v1590 = vmax.f32 %v1588, %v1589
    %v1591 = vrot.slane %v1590, 2
    %v1592 = vmax.f32 %v1590, %v1591
    %v1593 = vrot.slane %v1592, 1
    %v1594 = vmax.f32 %v1592, %v1593
    %v1595 = vmax.f32 %v1564, %v1565
    %v1596 = vrot.slane %v1595, 4
    %v1597 = vmax.f32 %v1595, %v1596
    %v1598 = vrot.slane %v1597, 2
    %v1599 = vmax.f32 %v1597, %v1598
    %v1600 = vrot.slane %v1599, 1
    %v1601 = vmax.f32 %v1599, %v1600
    %v1602 = vmax.f32 %v1566, %v1567
    %v1603 = vrot.slane %v1602, 4
    %v1604 = vmax.f32 %v1602, %v1603
    %v1605 = vrot.slane %v1604, 2
    %v1606 = vmax.f32 %v1604, %v1605
    %v1607 = vrot.slane %v1606, 1
    %v1608 = vmax.f32 %v1606, %v1607
    %v1609 = vmax.f32 %v1568, %v1569
    %v1610 = vrot.slane %v1609, 4
    %v1611 = vmax.f32 %v1609, %v1610
    %v1612 = vrot.slane %v1611, 2
    %v1613 = vmax.f32 %v1611, %v1612
    %v1614 = vrot.slane %v1613, 1
    %v1615 = vmax.f32 %v1613, %v1614
    %v1616 = vmax.f32 %v1570, %v1571
    %v1617 = vrot.slane %v1616, 4
    %v1618 = vmax.f32 %v1616, %v1617
    %v1619 = vrot.slane %v1618, 2
    %v1620 = vmax.f32 %v1618, %v1619
    %v1621 = vrot.slane %v1620, 1
    %v1622 = vmax.f32 %v1620, %v1621
    %v1623 = vmax.f32 %v1572, %v1573
    %v1624 = vrot.slane %v1623, 4
    %v1625 = vmax.f32 %v1623, %v1624
    %v1626 = vrot.slane %v1625, 2
    %v1627 = vmax.f32 %v1625, %v1626
    %v1628 = vrot.slane %v1627, 1
    %v1629 = vmax.f32 %v1627, %v1628
    %v1630 = vrot.slane %v981, 1
    %v1631 = vrot.slane %v987, 1
    %v1632 = vrot.slane %v993, 1
    %v1633 = vrot.slane %v999, 1
    %v1634 = vrot.slane %v1005, 1
    %v1635 = vrot.slane %v1011, 1
    %v1636 = vrot.slane %v1017, 1
    %v1637 = vrot.slane %v1023, 1
    %v1638 = vrot.slane %v1029, 1
    %v1639 = vrot.slane %v1035, 1
    %v1640 = vrot.slane %v1041, 1
    %v1641 = vrot.slane %v1047, 1
    %v1642 = vrot.slane %v1053, 1
    %v1643 = vrot.slane %v1059, 1
    %v1644 = vrot.slane %v1065, 1
    %v1645 = vrot.slane %v1071, 1
    %v1646 = vsel %vm1255, %v1644, %v1645
    %v1647 = vsel %vm1255, %v1643, %v1644
    %v1648 = vsel %vm1255, %v1642, %v1643
    %v1649 = vsel %vm1255, %v1641, %v1642
    %v1650 = vsel %vm1255, %v1640, %v1641
    %v1651 = vsel %vm1255, %v1639, %v1640
    %v1652 = vsel %vm1255, %v1638, %v1639
    %v1653 = vsel %vm1255, %v1637, %v1638
    %v1654 = vsel %vm1255, %v1636, %v1637
    %v1655 = vsel %vm1255, %v1635, %v1636
    %v1656 = vsel %vm1255, %v1634, %v1635
    %v1657 = vsel %vm1255, %v1633, %v1634
    %v1658 = vsel %vm1255, %v1632, %v1633
    %v1659 = vsel %vm1255, %v1631, %v1632
    %v1660 = vsel %vm1255, %v1630, %v1631
    %v1661 = vsel %vm1255, %v1645, %v1630
    %v1662 = vadd.f32 %v822, %v1660
    %v1663 = vadd.f32 %v828, %v1659
    %v1664 = vadd.f32 %v834, %v1658
    %v1665 = vadd.f32 %v840, %v1657
    %v1666 = vadd.f32 %v846, %v1656
    %v1667 = vadd.f32 %v852, %v1655
    %v1668 = vadd.f32 %v858, %v1654
    %v1669 = vadd.f32 %v864, %v1653
    %v1670 = vadd.f32 %v870, %v1652
    %v1671 = vadd.f32 %v876, %v1651
    %v1672 = vadd.f32 %v882, %v1650
    %v1673 = vadd.f32 %v888, %v1649
    %v1674 = vadd.f32 %v894, %v1648
    %v1675 = vadd.f32 %v900, %v1647
    %v1676 = vadd.f32 %v906, %v1646
    %v1677 = vadd.f32 %v912, %v1661
    %v1678 = vrot.slane %v983, 2
    %v1679 = vrot.slane %v989, 2
    %v1680 = vrot.slane %v995, 2
    %v1681 = vrot.slane %v1001, 2
    %v1682 = vrot.slane %v1007, 2
    %v1683 = vrot.slane %v1013, 2
    %v1684 = vrot.slane %v1019, 2
    %v1685 = vrot.slane %v1025, 2
    %v1686 = vrot.slane %v1031, 2
    %v1687 = vrot.slane %v1037, 2
    %v1688 = vrot.slane %v1043, 2
    %v1689 = vrot.slane %v1049, 2
    %v1690 = vrot.slane %v1055, 2
    %v1691 = vrot.slane %v1061, 2
    %v1692 = vrot.slane %v1067, 2
    %v1693 = vrot.slane %v1073, 2
    %v1694 = vsel %vm1304, %v1692, %v1693
    %v1695 = vsel %vm1304, %v1691, %v1692
    %v1696 = vsel %vm1304, %v1690, %v1691
    %v1697 = vsel %vm1304, %v1689, %v1690
    %v1698 = vsel %vm1304, %v1688, %v1689
    %v1699 = vsel %vm1304, %v1687, %v1688
    %v1700 = vsel %vm1304, %v1686, %v1687
    %v1701 = vsel %vm1304, %v1685, %v1686
    %v1702 = vsel %vm1304, %v1684, %v1685
    %v1703 = vsel %vm1304, %v1683, %v1684
    %v1704 = vsel %vm1304, %v1682, %v1683
    %v1705 = vsel %vm1304, %v1681, %v1682
    %v1706 = vsel %vm1304, %v1680, %v1681
    %v1707 = vsel %vm1304, %v1679, %v1680
    %v1708 = vsel %vm1304, %v1678, %v1679
    %v1709 = vsel %vm1304, %v1693, %v1678
    %v1710 = vadd.f32 %v1662, %v1708
    %v1711 = vadd.f32 %v1663, %v1707
    %v1712 = vadd.f32 %v1664, %v1706
    %v1713 = vadd.f32 %v1665, %v1705
    %v1714 = vadd.f32 %v1666, %v1704
    %v1715 = vadd.f32 %v1667, %v1703
    %v1716 = vadd.f32 %v1668, %v1702
    %v1717 = vadd.f32 %v1669, %v1701
    %v1718 = vadd.f32 %v1670, %v1700
    %v1719 = vadd.f32 %v1671, %v1699
    %v1720 = vadd.f32 %v1672, %v1698
    %v1721 = vadd.f32 %v1673, %v1697
    %v1722 = vadd.f32 %v1674, %v1696
    %v1723 = vadd.f32 %v1675, %v1695
    %v1724 = vadd.f32 %v1676, %v1694
    %v1725 = vadd.f32 %v1677, %v1709
    %v1726 = vrot.slane %v1142, 3
    %v1727 = vrot.slane %v1148, 3
    %v1728 = vrot.slane %v1154, 3
    %v1729 = vrot.slane %v1160, 3
    %v1730 = vrot.slane %v1166, 3
    %v1731 = vrot.slane %v1172, 3
    %v1732 = vrot.slane %v1178, 3
    %v1733 = vrot.slane %v1184, 3
    %v1734 = vrot.slane %v1190, 3
    %v1735 = vrot.slane %v1196, 3
    %v1736 = vrot.slane %v1202, 3
    %v1737 = vrot.slane %v1208, 3
    %v1738 = vrot.slane %v1214, 3
    %v1739 = vrot.slane %v1220, 3
    %v1740 = vrot.slane %v1226, 3
    %v1741 = vrot.slane %v1232, 3
    %v1742 = vsel %vm1523, %v1740, %v1741
    %v1743 = vsel %vm1523, %v1739, %v1740
    %v1744 = vsel %vm1523, %v1738, %v1739
    %v1745 = vsel %vm1523, %v1737, %v1738
    %v1746 = vsel %vm1523, %v1736, %v1737
    %v1747 = vsel %vm1523, %v1735, %v1736
    %v1748 = vsel %vm1523, %v1734, %v1735
    %v1749 = vsel %vm1523, %v1733, %v1734
    %v1750 = vsel %vm1523, %v1732, %v1733
    %v1751 = vsel %vm1523, %v1731, %v1732
    %v1752 = vsel %vm1523, %v1730, %v1731
    %v1753 = vsel %vm1523, %v1729, %v1730
    %v1754 = vsel %vm1523, %v1728, %v1729
    %v1755 = vsel %vm1523, %v1727, %v1728
    %v1756 = vsel %vm1523, %v1726, %v1727
    %v1757 = vsel %vm1523, %v1741, %v1726
    %v1758 = vadd.f32 %v1710, %v1756
    %v1759 = vadd.f32 %v1711, %v1755
    %v1760 = vadd.f32 %v1712, %v1754
    %v1761 = vadd.f32 %v1713, %v1753
    %v1762 = vadd.f32 %v1714, %v1752
    %v1763 = vadd.f32 %v1715, %v1751
    %v1764 = vadd.f32 %v1716, %v1750
    %v1765 = vadd.f32 %v1717, %v1749
    %v1766 = vadd.f32 %v1718, %v1748
    %v1767 = vadd.f32 %v1719, %v1747
    %v1768 = vadd.f32 %v1720, %v1746
    %v1769 = vadd.f32 %v1721, %v1745
    %v1770 = vadd.f32 %v1722, %v1744
    %v1771 = vadd.f32 %v1723, %v1743
    %v1772 = vadd.f32 %v1724, %v1742
    %v1773 = vadd.f32 %v1725, %v1757
    %v1774 = vrot.slane %v1144, 4
    %v1775 = vrot.slane %v1150, 4
    %v1776 = vrot.slane %v1156, 4
    %v1777 = vrot.slane %v1162, 4
    %v1778 = vrot.slane %v1168, 4
    %v1779 = vrot.slane %v1174, 4
    %v1780 = vrot.slane %v1180, 4
    %v1781 = vrot.slane %v1186, 4
    %v1782 = vrot.slane %v1192, 4
    %v1783 = vrot.slane %v1198, 4
    %v1784 = vrot.slane %v1204, 4
    %v1785 = vrot.slane %v1210, 4
    %v1786 = vrot.slane %v1216, 4
    %v1787 = vrot.slane %v1222, 4
    %v1788 = vrot.slane %v1228, 4
    %v1789 = vrot.slane %v1234, 4
    %vm1790 = vcmp.lt.s32.totalorder %v1237, 4
    %v1791 = vsel %vm1790, %v1788, %v1789
    %v1792 = vsel %vm1790, %v1787, %v1788
    %v1793 = vsel %vm1790, %v1786, %v1787
    %v1794 = vsel %vm1790, %v1785, %v1786
    %v1795 = vsel %vm1790, %v1784, %v1785
    %v1796 = vsel %vm1790, %v1783, %v1784
    %v1797 = vsel %vm1790, %v1782, %v1783
    %v1798 = vsel %vm1790, %v1781, %v1782
    %v1799 = vsel %vm1790, %v1780, %v1781
    %v1800 = vsel %vm1790, %v1779, %v1780
    %v1801 = vsel %vm1790, %v1778, %v1779
    %v1802 = vsel %vm1790, %v1777, %v1778
    %v1803 = vsel %vm1790, %v1776, %v1777
    %v1804 = vsel %vm1790, %v1775, %v1776
    %v1805 = vsel %vm1790, %v1774, %v1775
    %v1806 = vsel %vm1790, %v1789, %v1774
    %v1807 = vadd.f32 %v1758, %v1805
    %v1808 = vadd.f32 %v1759, %v1804
    %v1809 = vadd.f32 %v1760, %v1803
    %v1810 = vadd.f32 %v1761, %v1802
    %v1811 = vadd.f32 %v1762, %v1801
    %v1812 = vadd.f32 %v1763, %v1800
    %v1813 = vadd.f32 %v1764, %v1799
    %v1814 = vadd.f32 %v1765, %v1798
    %v1815 = vadd.f32 %v1766, %v1797
    %v1816 = vadd.f32 %v1767, %v1796
    %v1817 = vadd.f32 %v1768, %v1795
    %v1818 = vadd.f32 %v1769, %v1794
    %v1819 = vadd.f32 %v1770, %v1793
    %v1820 = vadd.f32 %v1771, %v1792
    %v1821 = vadd.f32 %v1772, %v1791
    %v1822 = vadd.f32 %v1773, %v1806
    %vm1823 = vcmp.lt.s32.totalorder %v1237, 12
    %vm1824 = vcmp.lt.s32.totalorder %v1238, 12
    %v1825 = vsel %vm1823, %v1807, -3.4028235e+38
    %v1826 = vsel %vm1824, %v1808, -3.4028235e+38
    %v1827 = vsel %vm1823, %v1809, -3.4028235e+38
    %v1828 = vsel %vm1824, %v1810, -3.4028235e+38
    %v1829 = vsel %vm1823, %v1811, -3.4028235e+38
    %v1830 = vsel %vm1824, %v1812, -3.4028235e+38
    %v1831 = vsel %vm1823, %v1813, -3.4028235e+38
    %v1832 = vsel %vm1824, %v1814, -3.4028235e+38
    %v1833 = vsel %vm1823, %v1815, -3.4028235e+38
    %v1834 = vsel %vm1824, %v1816, -3.4028235e+38
    %v1835 = vsel %vm1823, %v1817, -3.4028235e+38
    %v1836 = vsel %vm1824, %v1818, -3.4028235e+38
    %v1837 = vsel %vm1823, %v1819, -3.4028235e+38
    %v1838 = vsel %vm1824, %v1820, -3.4028235e+38
    %v1839 = vsel %vm1823, %v1821, -3.4028235e+38
    %v1840 = vsel %vm1824, %v1822, -3.4028235e+38
    %v1841 = vmax.f32 %v1825, %v1826
    %v1842 = vrot.slane %v1841, 4
    %v1843 = vmax.f32 %v1841, %v1842
    %v1844 = vrot.slane %v1843, 2
    %v1845 = vmax.f32 %v1843, %v1844
    %v1846 = vrot.slane %v1845, 1
    %v1847 = vmax.f32 %v1845, %v1846
    %v1848 = vmax.f32 %v1827, %v1828
    %v1849 = vrot.slane %v1848, 4
    %v1850 = vmax.f32 %v1848, %v1849
    %v1851 = vrot.slane %v1850, 2
    %v1852 = vmax.f32 %v1850, %v1851
    %v1853 = vrot.slane %v1852, 1
    %v1854 = vmax.f32 %v1852, %v1853
    %v1855 = vmax.f32 %v1829, %v1830
    %v1856 = vrot.slane %v1855, 4
    %v1857 = vmax.f32 %v1855, %v1856
    %v1858 = vrot.slane %v1857, 2
    %v1859 = vmax.f32 %v1857, %v1858
    %v1860 = vrot.slane %v1859, 1
    %v1861 = vmax.f32 %v1859, %v1860
    %v1862 = vmax.f32 %v1831, %v1832
    %v1863 = vrot.slane %v1862, 4
    %v1864 = vmax.f32 %v1862, %v1863
    %v1865 = vrot.slane %v1864, 2
    %v1866 = vmax.f32 %v1864, %v1865
    %v1867 = vrot.slane %v1866, 1
    %v1868 = vmax.f32 %v1866, %v1867
    %v1869 = vmax.f32 %v1833, %v1834
    %v1870 = vrot.slane %v1869, 4
    %v1871 = vmax.f32 %v1869, %v1870
    %v1872 = vrot.slane %v1871, 2
    %v1873 = vmax.f32 %v1871, %v1872
    %v1874 = vrot.slane %v1873, 1
    %v1875 = vmax.f32 %v1873, %v1874
    %v1876 = vmax.f32 %v1835, %v1836
    %v1877 = vrot.slane %v1876, 4
    %v1878 = vmax.f32 %v1876, %v1877
    %v1879 = vrot.slane %v1878, 2
    %v1880 = vmax.f32 %v1878, %v1879
    %v1881 = vrot.slane %v1880, 1
    %v1882 = vmax.f32 %v1880, %v1881
    %v1883 = vmax.f32 %v1837, %v1838
    %v1884 = vrot.slane %v1883, 4
    %v1885 = vmax.f32 %v1883, %v1884
    %v1886 = vrot.slane %v1885, 2
    %v1887 = vmax.f32 %v1885, %v1886
    %v1888 = vrot.slane %v1887, 1
    %v1889 = vmax.f32 %v1887, %v1888
    %v1890 = vmax.f32 %v1839, %v1840
    %v1891 = vrot.slane %v1890, 4
    %v1892 = vmax.f32 %v1890, %v1891
    %v1893 = vrot.slane %v1892, 2
    %v1894 = vmax.f32 %v1892, %v1893
    %v1895 = vrot.slane %v1894, 1
    %v1896 = vmax.f32 %v1894, %v1895
    %vm1905 = vcmask 1041409
    %v1906 = vsel %vm1905, %v1368, %v1361
    %vm1907 = vcmask 1042434
    %v1908 = vsel %vm1907, %v1375, %v1906
    %vm1909 = vcmask 1043459
    %v1910 = vsel %vm1909, %v1382, %v1908
    %vm1911 = vcmask 1044484
    %v1912 = vsel %vm1911, %v1389, %v1910
    %vm1913 = vcmask 1045509
    %v1914 = vsel %vm1913, %v1396, %v1912
    %vm1915 = vcmask 1046534
    %v1916 = vsel %vm1915, %v1403, %v1914
    %vm1917 = vcmask 1047559
    %v1918 = vsel %vm1917, %v1410, %v1916
    %v1928 = vsel %vm1905, %v1587, %v1580
    %v1929 = vsel %vm1907, %v1594, %v1928
    %v1930 = vsel %vm1909, %v1601, %v1929
    %v1931 = vsel %vm1911, %v1608, %v1930
    %v1932 = vsel %vm1913, %v1615, %v1931
    %v1933 = vsel %vm1915, %v1622, %v1932
    %v1934 = vsel %vm1917, %v1629, %v1933
    %v1944 = vsel %vm1905, %v1854, %v1847
    %v1945 = vsel %vm1907, %v1861, %v1944
    %v1946 = vsel %vm1909, %v1868, %v1945
    %v1947 = vsel %vm1911, %v1875, %v1946
    %v1948 = vsel %vm1913, %v1882, %v1947
    %v1949 = vsel %vm1915, %v1889, %v1948
    %v1950 = vsel %vm1917, %v1896, %v1949
    %v1952 = vld [vmem:[%s2] sm:$0x7]
    %v1954 = vlaneseq
    %v1955 = vshrl.u32 %v1954, 7
    %v1956 = vsub.s32 0, %v1955
    %v1957 = vrot.slane %v1952, %v1956
    %v1958 = vlaneseq
    %v1959 = vshrl.u32 %v1958, 7
    %v1960 = vsub.s32 1, %v1959
    %v1961 = vrot.slane %v1952, %v1960
    %v1962 = vlaneseq
    %v1963 = vshrl.u32 %v1962, 7
    %v1964 = vsub.s32 2, %v1963
    %v1965 = vrot.slane %v1952, %v1964
    %v1969 = vadd.f32 %v1918, %v1957
    %v1970 = vadd.f32 %v1934, %v1961
    %v1971 = vadd.f32 %v1950, %v1965
    %v1972 = vmax.f32 %v1969, 0.0
    %v1973 = vmax.f32 %v1970, 0.0
    %v1974 = vmax.f32 %v1971, 0.0
    %v1975 = vld [vmem:[#allocation7] sm:$0xff]
    %v1976 = vld [vmem:[#allocation7 + $0x8] sm:$0xff]
    %v1977 = vld [vmem:[#allocation7 + $0x10] sm:$0xff]
    %v1978 = vld [vmem:[#allocation7 + $0x18] sm:$0xff]
    %v1979 = vld [vmem:[#allocation7 + $0x20] sm:$0xff]
    %v1980 = vld [vmem:[#allocation7 + $0x28] sm:$0xff]
    %v1981 = vld [vmem:[#allocation7 + $0x30] sm:$0xff]
    %v1982 = vld [vmem:[#allocation7 + $0x38] sm:$0xff]
    %v1983 = vld [vmem:[#allocation7 + $0x40] sm:$0xff]
    %v1984 = vld [vmem:[#allocation7 + $0x48] sm:$0xff]
    %v1985 = vld [vmem:[#allocation7 + $0x50] sm:$0xff]
    %v1986 = vld [vmem:[#allocation7 + $0x58] sm:$0xff]
    %v1987 = vld [vmem:[#allocation7 + $0x60] sm:$0xff]
    %v1988 = vld [vmem:[#allocation7 + $0x68] sm:$0xff]
    %v1989 = vld [vmem:[#allocation7 + $0x70] sm:$0xff]
    %v1990 = vld [vmem:[#allocation7 + $0x78] sm:$0xff]
    %v1991 = vld [vmem:[#allocation7 + $0x80] sm:$0xff]
    %v1992 = vld [vmem:[#allocation7 + $0x88] sm:$0xff]
    %v1993 = vld [vmem:[#allocation7 + $0x90] sm:$0xff]
    %v1994 = vld [vmem:[#allocation7 + $0x98] sm:$0xff]
    %v1995 = vld [vmem:[#allocation7 + $0xa0] sm:$0xff]
    %v1996 = vld [vmem:[#allocation7 + $0xa8] sm:$0xff]
    %v1997 = vld [vmem:[#allocation7 + $0xb0] sm:$0xff]
    %v1998 = vld [vmem:[#allocation7 + $0xb8] sm:$0xff]
    %v1999 = vld [vmem:[#allocation7 + $0xc0] sm:$0xff]
    %v2000 = vld [vmem:[#allocation7 + $0xc8] sm:$0xff]
    %v2001 = vld [vmem:[#allocation7 + $0xd0] sm:$0xff]
    %v2002 = vld [vmem:[#allocation7 + $0xd8] sm:$0xff]
    %v2003 = vld [vmem:[#allocation7 + $0xe0] sm:$0xff]
    %v2004 = vld [vmem:[#allocation7 + $0xe8] sm:$0xff]
    %v2005 = vld [vmem:[#allocation7 + $0xf0] sm:$0xff]
    %v2006 = vld [vmem:[#allocation7 + $0xf8] sm:$0xff]
    %v2007 = vld [vmem:[#allocation7 + $0x100] sm:$0xff]
    %v2008 = vld [vmem:[#allocation7 + $0x108] sm:$0xff]
    %v2009 = vld [vmem:[#allocation7 + $0x110] sm:$0xff]
    %v2010 = vld [vmem:[#allocation7 + $0x118] sm:$0xff]
    %v2011 = vld [vmem:[#allocation7 + $0x120] sm:$0xff]
    %v2012 = vld [vmem:[#allocation7 + $0x128] sm:$0xff]
    %v2013 = vld [vmem:[#allocation7 + $0x130] sm:$0xff]
    %v2014 = vld [vmem:[#allocation7 + $0x138] sm:$0xff]
    %v2015 = vld [vmem:[#allocation7 + $0x140] sm:$0xff]
    %v2016 = vld [vmem:[#allocation7 + $0x148] sm:$0xff]
    %v2017 = vld [vmem:[#allocation7 + $0x150] sm:$0xff]
    %v2018 = vld [vmem:[#allocation7 + $0x158] sm:$0xff]
    %v2019 = vld [vmem:[#allocation7 + $0x160] sm:$0xff]
    %v2020 = vld [vmem:[#allocation7 + $0x168] sm:$0xff]
    %v2021 = vld [vmem:[#allocation7 + $0x170] sm:$0xff]
    %v2022 = vld [vmem:[#allocation7 + $0x178] sm:$0xff]
    %v2023 = vld [vmem:[%s4] sm:$0x1]
    %v2025 = vlaneseq
    %v2026 = vshrl.u32 %v2025, 7
    %v2027 = vsub.s32 0, %v2026
    %v2028 = vrot.slane %v2023, %v2027
    %2030 = vmatprep.subr.mxu0 0.0
    %2031 = vmatpush1.msra.mxu0 %v1975
    %2032 = vmatprep.subr.mxu0 0.0
    %2033 = vmatpush1.msra.mxu0 %v1976
    %2034 = vmatprep.subr.mxu0 0.0
    %2035 = vmatpush1.msra.mxu0 %v1977
    %2036 = vmatprep.subr.mxu0 0.0
    %2037 = vmatpush1.msra.mxu0 %v1978
    %2038 = vmatprep.subr.mxu0 0.0
    %2039 = vmatpush1.msra.mxu0 %v1979
    %2040 = vmatprep.subr.mxu0 0.0
    %2041 = vmatpush1.msra.mxu0 %v1980
    %2042 = vmatprep.subr.mxu0 0.0
    %2043 = vmatpush1.msra.mxu0 %v1981
    %2044 = vmatprep.subr.mxu0 0.0
    %2045 = vmatpush1.msra.mxu0 %v1982
    %2046 = vmatprep.subr.mxu0 0.0
    %2047 = vmatpush1.msra.mxu0 %v1983
    %2048 = vmatprep.subr.mxu0 0.0
    %2049 = vmatpush1.msra.mxu0 %v1984
    %2050 = vmatprep.subr.mxu0 0.0
    %2051 = vmatpush1.msra.mxu0 %v1985
    %2052 = vmatprep.subr.mxu0 0.0
    %2053 = vmatpush1.msra.mxu0 %v1986
    %2054 = vmatprep.subr.mxu0 0.0
    %2055 = vmatpush1.msra.mxu0 %v1987
    %2056 = vmatprep.subr.mxu0 0.0
    %2057 = vmatpush1.msra.mxu0 %v1988
    %2058 = vmatprep.subr.mxu0 0.0
    %2059 = vmatpush1.msra.mxu0 %v1989
    %2060 = vmatprep.subr.mxu0 0.0
    %2061 = vmatpush1.msra.mxu0 %v1990
    %2062 = vmatprep.subr.mxu0 0.0
    %2063 = vmatpush1.msra.mxu0 %v1991
    %2064 = vmatprep.subr.mxu0 0.0
    %2065 = vmatpush1.msra.mxu0 %v1992
    %2066 = vmatprep.subr.mxu0 0.0
    %2067 = vmatpush1.msra.mxu0 %v1993
    %2068 = vmatprep.subr.mxu0 0.0
    %2069 = vmatpush1.msra.mxu0 %v1994
    %2070 = vmatprep.subr.mxu0 0.0
    %2071 = vmatpush1.msra.mxu0 %v1995
    %2072 = vmatprep.subr.mxu0 0.0
    %2073 = vmatpush1.msra.mxu0 %v1996
    %2074 = vmatprep.subr.mxu0 0.0
    %2075 = vmatpush1.msra.mxu0 %v1997
    %2076 = vmatprep.subr.mxu0 0.0
    %2077 = vmatpush1.msra.mxu0 %v1998
    %2078 = vmatprep.subr.mxu0 0.0
    %2079 = vmatpush1.msra.mxu0 %v1999
    %2080 = vmatprep.subr.mxu0 0.0
    %2081 = vmatpush1.msra.mxu0 %v2000
    %2082 = vmatprep.subr.mxu0 0.0
    %2083 = vmatpush1.msra.mxu0 %v2001
    %2084 = vmatprep.subr.mxu0 0.0
    %2085 = vmatpush1.msra.mxu0 %v2002
    %2086 = vmatprep.subr.mxu0 0.0
    %2087 = vmatpush1.msra.mxu0 %v2003
    %2088 = vmatprep.subr.mxu0 0.0
    %2089 = vmatpush1.msra.mxu0 %v2004
    %2090 = vmatprep.subr.mxu0 0.0
    %2091 = vmatpush1.msra.mxu0 %v2005
    %2092 = vmatprep.subr.mxu0 0.0
    %2093 = vmatpush1.msra.mxu0 %v2006
    %2094 = vmatprep.mubr.f32.mxu0 %v1973
    %2095 = vmatmul.mubr.f32.gmra.mrb[0].mxu0 %v1972
    %v2096 = vpop.f32.mrb[0].mxu0
    %v2097 = vadd.f32 %v2028, %v2096
    %v2098 = vpop.f32.mrb[0].mxu0
    %2099 = vdwg.mxu0
    %2100 = vmatprep.subr.mxu0 0.0
    %2101 = vmatpush1.msra.mxu0 %v2007
    %2102 = vmatprep.subr.mxu0 0.0
    %2103 = vmatpush1.msra.mxu0 %v2008
    %2104 = vmatprep.subr.mxu0 0.0
    %2105 = vmatpush1.msra.mxu0 %v2009
    %2106 = vmatprep.subr.mxu0 0.0
    %2107 = vmatpush1.msra.mxu0 %v2010
    %2108 = vmatprep.subr.mxu0 0.0
    %2109 = vmatpush1.msra.mxu0 %v2011
    %2110 = vmatprep.subr.mxu0 0.0
    %2111 = vmatpush1.msra.mxu0 %v2012
    %2112 = vmatprep.subr.mxu0 0.0
    %2113 = vmatpush1.msra.mxu0 %v2013
    %2114 = vmatprep.subr.mxu0 0.0
    %2115 = vmatpush1.msra.mxu0 %v2014
    %2116 = vmatprep.subr.mxu0 0.0
    %2117 = vmatpush1.msra.mxu0 %v2015
    %2118 = vmatprep.subr.mxu0 0.0
    %2119 = vmatpush1.msra.mxu0 %v2016
    %2120 = vmatprep.subr.mxu0 0.0
    %2121 = vmatpush1.msra.mxu0 %v2017
    %2122 = vmatprep.subr.mxu0 0.0
    %2123 = vmatpush1.msra.mxu0 %v2018
    %2124 = vmatprep.subr.mxu0 0.0
    %2125 = vmatpush1.msra.mxu0 %v2019
    %2126 = vmatprep.subr.mxu0 0.0
    %2127 = vmatpush1.msra.mxu0 %v2020
    %2128 = vmatprep.subr.mxu0 0.0
    %2129 = vmatpush1.msra.mxu0 %v2021
    %2130 = vmatprep.subr.mxu0 0.0
    %2131 = vmatpush1.msra.mxu0 %v2022
    %2132 = vmatprep.subr.mxu0 0.0
    %2133 = vmatpush1.msra.mxu0 0.0
    %2134 = vmatprep.subr.mxu0 0.0
    %2135 = vmatpush1.msra.mxu0 0.0
    %2136 = vmatprep.subr.mxu0 0.0
    %2137 = vmatpush1.msra.mxu0 0.0
    %2138 = vmatprep.subr.mxu0 0.0
    %2139 = vmatpush1.msra.mxu0 0.0
    %2140 = vmatprep.subr.mxu0 0.0
    %2141 = vmatpush1.msra.mxu0 0.0
    %2142 = vmatprep.subr.mxu0 0.0
    %2143 = vmatpush1.msra.mxu0 0.0
    %2144 = vmatprep.subr.mxu0 0.0
    %2145 = vmatpush1.msra.mxu0 0.0
    %2146 = vmatprep.subr.mxu0 0.0
    %2147 = vmatpush1.msra.mxu0 0.0
    %2148 = vmatprep.subr.mxu0 0.0
    %2149 = vmatpush1.msra.mxu0 0.0
    %2150 = vmatprep.subr.mxu0 0.0
    %2151 = vmatpush1.msra.mxu0 0.0
    %2152 = vmatprep.subr.mxu0 0.0
    %2153 = vmatpush1.msra.mxu0 0.0
    %2154 = vmatprep.subr.mxu0 0.0
    %2155 = vmatpush1.msra.mxu0 0.0
    %2156 = vmatprep.subr.mxu0 0.0
    %2157 = vmatpush1.msra.mxu0 0.0
    %2158 = vmatprep.subr.mxu0 0.0
    %2159 = vmatpush1.msra.mxu0 0.0
    %2160 = vmatprep.subr.mxu0 0.0
    %2161 = vmatpush1.msra.mxu0 0.0
    %2162 = vmatprep.subr.mxu0 0.0
    %2163 = vmatpush1.msra.mxu0 0.0
    %2164 = vmatprep.mubr.f32.mxu0 0.0
    %2165 = vmatmul.mubr.f32.gmra.mrb[0].mxu0 %v1974
    %v2166 = vpop.f32.mrb[0].mxu0
    %v2167 = vadd.f32 %v2097, %v2166
    %v2168 = vpop.f32.mrb[0].mxu0
    %2169 = vdwg.mxu0
    %2170 = vst [vmem:[#allocation8] sm:$0xff] %v2167
    // Predicated region
    $region34: #{tpu_custom_call.1} parent=1 // pred_check
      _
    $region35: #{tpu_custom_call.1} parent=1 // pred_check_branch
      %2172 = sbr.rel (0) target = $region37
    $region36: #{tpu_custom_call.1} parent=1 // pred_region
      %s2174 = ssub.s32 128, 128
      %2175 = vsyncadd [#allocation4], %s2174
      %s2177 = sshll.u32 [#allocation8], 4
      %s2178 = int_to_ptr.vmem [resolvable:$true] %s2177
      %2180 = dma.vmem_to_hbm [thread:$0]  %s2178, 128, %s5, [#allocation4]
    $region37: #{tpu_custom_call.1} parent=1 // pred_fallthru
      _
    // Predicated region
    $region38: #{tpu_custom_call.1} parent=1 // pred_check
      _
    $region39: #{tpu_custom_call.1} parent=1 // pred_check_branch
      %2182 = sbr.rel (0) target = $region41
    $region40: #{tpu_custom_call.1} parent=1 // pred_region
      %2183 = dma.done [#allocation4], 128
    $region41: #{tpu_custom_call.1} parent=1 // pred_fallthru
      _
    %2184 = vsyncpa [#allocation3], 1
    %2185 = vsyncpa [#allocation6], 1
    %2186 = vsyncpa [#allocation4], 1

</llo_original>
